<compile_context>
chip_gen: v5e
topology: v5e:2x2
jax: 0.10.0
libtpu: 0.0.40
codegen_flags: <defaults>
</compile_context>

<pallas_src>
import numpy as np

import jax
import jax.numpy as jnp
from jax.experimental import pallas as pl
from jax.experimental.pallas import tpu as pltpu

LEAKY_SLOPE = 0.2     # conventional slope for GAN discriminator blocks
IN_EPS = 1e-5         # PyTorch InstanceNorm2d default eps


def _round_up(x, m):
    return (x + m - 1) // m * m


# --------------------------------------------------------------------- static constants
# Conv of block i produces lanes indexed r = ho*Wp + wo ("padded-flat" space, only
# r with wo < Wo are valid).  These numpy helpers build (a) the validity mask for
# the masked InstanceNorm reductions and (b) the small matrix that maps post-
# activation lanes to the next block's zero-padded input lanes (incl. 2x2 avg pool),
# or to the final row-major spatial output.  Matrix values are exactly {0,0.25,1},
# so bf16 storage of the matrix itself is lossless.

def _valid_mask(Wp, Ho, Wo, L):
    m = np.zeros((1, L), np.float32)
    for ho in range(Ho):
        m[0, ho * Wp: ho * Wp + Wo] = 1.0
    return m


def _pool_pad_matrix(Wp, Ho, Wo, pool, next_pad, L, last):
    if pool:
        Po, Qo = Ho // 2, Wo // 2           # floor semantics == F.avg_pool2d default
    else:
        Po, Qo = Ho, Wo
    if last:
        cols = Po * Qo                      # row-major valid spatial positions

        def col_idx(po, qo):
            return po * Qo + qo
    else:
        n_wp = Qo + 2 * next_pad            # next block's padded width
        n_hp = Po + 2 * next_pad
        cols = n_hp * n_wp                  # zero columns == the next conv's padding

        def col_idx(po, qo):
            return (po + next_pad) * n_wp + (qo + next_pad)

    P = np.zeros((L, cols), np.float32)
    for po in range(Po):
        for qo in range(Qo):
            c = col_idx(po, qo)
            if pool:
                for dh in range(2):
                    for dw in range(2):
                        P[(2 * po + dh) * Wp + (2 * qo + dw), c] = 0.25
            else:
                P[po * Wp + qo, c] = 1.0
    return P


# --------------------------------------------------------------------------- the kernel

def _build_kernel(plan, n_in, *, slope, eps):
    n_blocks = len(plan)

    def kernel(*refs):
        in_refs = refs[:n_in]
        out_ref = refs[n_in]
        scratch = refs[n_in + 1:]
        stage_refs = scratch[:n_blocks]          # per-block (K*K*Cin_p, L) f32
        act_refs = scratch[n_blocks:]            # inter-block (Cout, Lp_next) f32

        it = iter(in_refs)
        src = next(it)                           # (Cin_p0, Lp0) channel-major input
        y_last = None
        for bi, blk in enumerate(plan):
            w_ref = next(it)                     # (Cout, K*K*Cin_p) bf16
            b_ref = next(it)                     # (Cout, 1) f32
            if blk["norm"]:
                g_ref = next(it)                 # (Cout, 1)
                be_ref = next(it)                # (Cout, 1)
                m_ref = next(it)                 # (1, L) validity mask
            p_ref = next(it)                     # (L, cols_next) bf16 pool/pad/select

            L = blk["L"]
            cinp = blk["Cin_p"]
            stage = stage_refs[bi]

            # ---- gather the K*K shifted lane-slices ONCE into the staging buffer
            #      (all row-group starts are multiples of 8 -> aligned f32 stores)
            for idx, s in enumerate(blk["shifts"]):
                stage[pl.ds(idx * cinp, cinp), :] = src[:, pl.ds(s, L)]

            # ---- conv: single bf16 MXU pass, contraction = K*K*Cin_p, f32 accumulate
            acc = jnp.dot(w_ref[...], stage[...].astype(jnp.bfloat16),
                          preferred_element_type=jnp.float32)       # (Cout, L)
            acc = acc + b_ref[...]

            # ---- InstanceNorm (masked, biased variance) + affine — lane reductions
            if blk["norm"]:
                m = m_ref[...]
                mean = jnp.sum(acc * m, axis=-1, keepdims=True) * blk["inv_cnt"]
                cent = acc - mean
                var = jnp.sum(cent * cent * m, axis=-1, keepdims=True) * blk["inv_cnt"]
                y = cent * jax.lax.rsqrt(var + eps)
                y = y * g_ref[...] + be_ref[...]
            else:
                y = acc

            # ---- LeakyReLU
            y = jnp.where(y >= 0, y, slope * y)

            # ---- validity select (+ 2x2 avg pool) (+ zero pad for the next conv)
            nxt = jnp.dot(y.astype(jnp.bfloat16), p_ref[...],
                          preferred_element_type=jnp.float32)       # (Cout, cols)

            if bi + 1 < n_blocks:
                act_refs[bi][...] = nxt          # next block's channel-major input
                src = act_refs[bi]
            else:
                y_last = nxt                     # (C_last, S_last) valid lanes

        # ---- final 1x1 conv (Cout=1): VPU multiply + sublane reduce (no MXU pass)
        wf_ref = next(it)                        # (C_last, 1)
        bf_ref = next(it)                        # (1, 1)
        yf = jnp.sum(y_last * wf_ref[...], axis=0, keepdims=True) + bf_ref[...]
        out_ref[...] = yf.astype(out_ref.dtype)  # (1, S_last) lane-dense store

    return kernel


# ------------------------------------------------------------------------ discriminator

def init_params(key, num_channels=4, block_expansion=8, num_blocks=3, kernel_size=4):
    blocks = []
    in_ch = num_channels
    for i in range(num_blocks):
        out_ch = block_expansion * 2 ** i
        key, kw_, kb_ = jax.random.split(key, 3)
        blocks.append(dict(
            w=jax.random.normal(kw_, (kernel_size, kernel_size, in_ch, out_ch),
                                jnp.float32) * 0.05,
            b=jax.random.normal(kb_, (1, out_ch), jnp.float32) * 0.05,
            norm=(i != 0),                          # bn_type=None only for block 0
            gamma=jnp.ones((1, out_ch), jnp.float32),
            beta=jnp.zeros((1, out_ch), jnp.float32),
            pool=(i != num_blocks - 1),             # pool_type=None for last down block
        ))
        in_ch = out_ch
    # final 1x1 conv block: no norm, no activation, no pool
    key, kw_, kb_ = jax.random.split(key, 3)
    blocks.append(dict(
        w=jax.random.normal(kw_, (1, 1, in_ch, 1), jnp.float32) * 0.05,
        b=jax.random.normal(kb_, (1, 1), jnp.float32) * 0.05,
        norm=False, gamma=None, beta=None, pool=False,
    ))
    return dict(blocks=blocks)


def discriminator_forward(x_nchw, params):
    blocks = params["blocks"]
    down, final = blocks[:-1], blocks[-1]

    x = x_nchw.astype(jnp.float32)
    N, Cin0, H, W = x.shape

    # ---------------- static geometry plan (pure Python / numpy) ----------------
    plan = []
    cur_h, cur_w = H, W
    for i, p in enumerate(down):
        K = int(p["w"].shape[0])
        pad = (K - 1) // 2
        Cin, Cout = int(p["w"].shape[2]), int(p["w"].shape[3])
        Cin_p = _round_up(Cin, 8)                   # sublane-aligned channel count
        Hp, Wp = cur_h + 2 * pad, cur_w + 2 * pad
        Ho, Wo = Hp - K + 1, Wp - K + 1
        L = (Ho - 1) * Wp + Wo
        last = i == len(down) - 1
        pool = bool(p["pool"])
        next_pad = 0 if last else (int(down[i + 1]["w"].shape[0]) - 1) // 2
        Po, Qo = (Ho // 2, Wo // 2) if pool else (Ho, Wo)
        plan.append(dict(
            K=K, pad=pad, Cin=Cin, Cin_p=Cin_p, Cout=Cout, Hp=Hp, Wp=Wp, Ho=Ho,
            Wo=Wo, L=L, pool=pool, norm=bool(p["norm"]), last=last,
            next_pad=next_pad, Po=Po, Qo=Qo,
            shifts=tuple(kh * Wp + kw for kh in range(K) for kw in range(K)),
            inv_cnt=1.0 / float(Ho * Wo),
        ))
        cur_h, cur_w = Po, Qo
    S_last = plan[-1]["Po"] * plan[-1]["Qo"]

    # ------------- channel-major padded-flat input, built host-side -------------
    pad0 = plan[0]["pad"]
    Hp0, Wp0, Cin_p0 = plan[0]["Hp"], plan[0]["Wp"], plan[0]["Cin_p"]
    xp = jnp.pad(x, ((0, 0), (0, Cin_p0 - Cin0), (pad0, pad0), (pad0, pad0)))
    x0 = xp.reshape(N, Cin_p0, Hp0 * Wp0)           # (N, C, Hp*Wp): spatial on lanes

    operands = [x0]
    in_specs = [pl.BlockSpec((None, Cin_p0, Hp0 * Wp0), lambda n: (n, 0, 0))]
    stage_scratch = []
    act_scratch = []

    def add_const(arr):
        operands.append(arr)
        in_specs.append(pl.BlockSpec(arr.shape, lambda n, _r=arr.ndim: (0,) * _r))

    for p, blk in zip(down, plan):
        K, Cin, Cin_p, Cout = blk["K"], blk["Cin"], blk["Cin_p"], blk["Cout"]
        # weight -> (Cout, K*K*Cin_p) bf16, column order (kh*K + kw)*Cin_p + cin
        w = jnp.transpose(p["w"], (3, 0, 1, 2))     # (Cout, K, K, Cin)
        if Cin_p != Cin:
            w = jnp.pad(w, ((0, 0), (0, 0), (0, 0), (0, Cin_p - Cin)))
        add_const(w.reshape(Cout, K * K * Cin_p).astype(jnp.bfloat16))
        add_const(p["b"].reshape(Cout, 1).astype(jnp.float32))
        if blk["norm"]:
            add_const(p["gamma"].reshape(Cout, 1).astype(jnp.float32))
            add_const(p["beta"].reshape(Cout, 1).astype(jnp.float32))
            add_const(jnp.asarray(_valid_mask(blk["Wp"], blk["Ho"], blk["Wo"],
                                              blk["L"])))
        add_const(jnp.asarray(
            _pool_pad_matrix(blk["Wp"], blk["Ho"], blk["Wo"], blk["pool"],
                             blk["next_pad"], blk["L"], blk["last"])
        ).astype(jnp.bfloat16))

        stage_scratch.append(pltpu.VMEM((K * K * Cin_p, blk["L"]), jnp.float32))
        if not blk["last"]:
            n_hp = blk["Po"] + 2 * blk["next_pad"]
            n_wp = blk["Qo"] + 2 * blk["next_pad"]
            act_scratch.append(pltpu.VMEM((Cout, n_hp * n_wp), jnp.float32))

    add_const(final["w"].reshape(-1, 1).astype(jnp.float32))    # (C_last, 1)
    add_const(final["b"].reshape(1, 1).astype(jnp.float32))     # (1, 1)

    n_in = len(operands)
    kernel = _build_kernel(plan, n_in, slope=LEAKY_SLOPE, eps=IN_EPS)

    out = pl.pallas_call(
        kernel,
        out_shape=jax.ShapeDtypeStruct((N, 1, S_last), jnp.float32),
        grid=(N,),
        in_specs=in_specs,
        out_specs=pl.BlockSpec((None, 1, S_last), lambda n: (n, 0, 0)),
        scratch_shapes=stage_scratch + act_scratch,
        compiler_params=pltpu.CompilerParams(
            dimension_semantics=("parallel",),
            vmem_limit_bytes=32 * 1024 * 1024,
        ),
    )(*operands)

    # (N, 1, S_last) lanes are row-major (Po, Qo) -> already NCHW after reshape
    return out.reshape(N, 1, plan[-1]["Po"], plan[-1]["Qo"])


if __name__ == "__main__":
    key = jax.random.PRNGKey(0)
    key_p, key_x = jax.random.split(key)

    # small config consistent with the module: 3 down blocks + final 1x1 conv
    params = init_params(key_p, num_channels=4, block_expansion=8,
                         num_blocks=3, kernel_size=4)
    x = jax.random.normal(key_x, (2, 4, 16, 16), jnp.float32)   # NCHW

    out = discriminator_forward(x, params)
    jax.block_until_ready(out)
    assert out.shape == (2, 1, 2, 2), out.shape
    assert bool(jnp.all(jnp.isfinite(out)))
    print("KERNEL_OK")
</pallas_src>

<mosaic_0001>
module attributes {stable_mosaic.version = 11 : i64} {
  func.func @kernel(%arg0: i32, %arg1: memref<1x8x324xf32, #tpu.memory_space<vmem>>, %arg2: memref<8x128xbf16, #tpu.memory_space<vmem>>, %arg3: memref<8x1xf32, #tpu.memory_space<vmem>>, %arg4: memref<267x81xbf16, #tpu.memory_space<vmem>>, %arg5: memref<16x128xbf16, #tpu.memory_space<vmem>>, %arg6: memref<16x1xf32, #tpu.memory_space<vmem>>, %arg7: memref<16x1xf32, #tpu.memory_space<vmem>>, %arg8: memref<16x1xf32, #tpu.memory_space<vmem>>, %arg9: memref<1x51xf32, #tpu.memory_space<vmem>>, %arg10: memref<51x25xbf16, #tpu.memory_space<vmem>>, %arg11: memref<32x256xbf16, #tpu.memory_space<vmem>>, %arg12: memref<32x1xf32, #tpu.memory_space<vmem>>, %arg13: memref<32x1xf32, #tpu.memory_space<vmem>>, %arg14: memref<32x1xf32, #tpu.memory_space<vmem>>, %arg15: memref<1x7xf32, #tpu.memory_space<vmem>>, %arg16: memref<7x4xbf16, #tpu.memory_space<vmem>>, %arg17: memref<32x1xf32, #tpu.memory_space<vmem>>, %arg18: memref<1x1xf32, #tpu.memory_space<vmem>>, %arg19: memref<1x1x4xf32, #tpu.memory_space<vmem>>, %arg20: memref<128x267xf32, #tpu.memory_space<vmem>>, %arg21: memref<128x51xf32, #tpu.memory_space<vmem>>, %arg22: memref<256x7xf32, #tpu.memory_space<vmem>>, %arg23: memref<8x81xf32, #tpu.memory_space<vmem>>, %arg24: memref<16x25xf32, #tpu.memory_space<vmem>>) attributes {dimension_semantics = [#tpu.dimension_semantics<parallel>], iteration_bounds = array<i64: 2>, scalar_prefetch = 0 : i64, scratch_operands = 5 : i64, tpu.core_type = #tpu.core_type<tc>, window_params = [{transform_indices = @transform_0, window_bounds = array<i64: 1, 8, 324>}, {pipeline_mode = #tpu.pipeline_mode<synchronous>, transform_indices = @transform_1, window_bounds = array<i64: 8, 128>}, {pipeline_mode = #tpu.pipeline_mode<synchronous>, transform_indices = @transform_2, window_bounds = array<i64: 8, 1>}, {pipeline_mode = #tpu.pipeline_mode<synchronous>, transform_indices = @transform_3, window_bounds = array<i64: 267, 81>}, {pipeline_mode = #tpu.pipeline_mode<synchronous>, transform_indices = @transform_4, window_bounds = array<i64: 16, 128>}, {pipeline_mode = #tpu.pipeline_mode<synchronous>, transform_indices = @transform_5, window_bounds = array<i64: 16, 1>}, {pipeline_mode = #tpu.pipeline_mode<synchronous>, transform_indices = @transform_6, window_bounds = array<i64: 16, 1>}, {pipeline_mode = #tpu.pipeline_mode<synchronous>, transform_indices = @transform_7, window_bounds = array<i64: 16, 1>}, {pipeline_mode = #tpu.pipeline_mode<synchronous>, transform_indices = @transform_8, window_bounds = array<i64: 1, 51>}, {pipeline_mode = #tpu.pipeline_mode<synchronous>, transform_indices = @transform_9, window_bounds = array<i64: 51, 25>}, {pipeline_mode = #tpu.pipeline_mode<synchronous>, transform_indices = @transform_10, window_bounds = array<i64: 32, 256>}, {pipeline_mode = #tpu.pipeline_mode<synchronous>, transform_indices = @transform_11, window_bounds = array<i64: 32, 1>}, {pipeline_mode = #tpu.pipeline_mode<synchronous>, transform_indices = @transform_12, window_bounds = array<i64: 32, 1>}, {pipeline_mode = #tpu.pipeline_mode<synchronous>, transform_indices = @transform_13, window_bounds = array<i64: 32, 1>}, {pipeline_mode = #tpu.pipeline_mode<synchronous>, transform_indices = @transform_14, window_bounds = array<i64: 1, 7>}, {pipeline_mode = #tpu.pipeline_mode<synchronous>, transform_indices = @transform_15, window_bounds = array<i64: 7, 4>}, {pipeline_mode = #tpu.pipeline_mode<synchronous>, transform_indices = @transform_16, window_bounds = array<i64: 32, 1>}, {pipeline_mode = #tpu.pipeline_mode<synchronous>, transform_indices = @transform_17, window_bounds = array<i64: 1, 1>}, {transform_indices = @transform_18, window_bounds = array<i64: 1, 1, 4>}]} {
    %c0 = arith.constant 0 : index
    %c0_0 = arith.constant 0 : index
    %c0_1 = arith.constant 0 : index
    %0 = vector.load %arg1[%c0, %c0_0, %c0_1] : memref<1x8x324xf32, #tpu.memory_space<vmem>>, vector<1x8x267xf32>
    %1 = vector.shape_cast %0 : vector<1x8x267xf32> to vector<8x267xf32>
    %c0_2 = arith.constant 0 : index
    %c0_3 = arith.constant 0 : index
    %2 = vector.load %arg20[%c0_2, %c0_3] : memref<128x267xf32, #tpu.memory_space<vmem>>, vector<8x267xf32>
    tpu.vector_store %arg20[%c0_2, %c0_3], %1 {strides = array<i32>} : memref<128x267xf32, #tpu.memory_space<vmem>>, vector<8x267xf32>,
    %c0_4 = arith.constant 0 : index
    %c0_5 = arith.constant 0 : index
    %c1 = arith.constant 1 : index
    %3 = vector.load %arg1[%c0_4, %c0_5, %c1] : memref<1x8x324xf32, #tpu.memory_space<vmem>>, vector<1x8x267xf32>
    %4 = vector.shape_cast %3 : vector<1x8x267xf32> to vector<8x267xf32>
    %c8 = arith.constant 8 : index
    %c0_6 = arith.constant 0 : index
    %5 = vector.load %arg20[%c8, %c0_6] : memref<128x267xf32, #tpu.memory_space<vmem>>, vector<8x267xf32>
    tpu.vector_store %arg20[%c8, %c0_6], %4 {strides = array<i32>} : memref<128x267xf32, #tpu.memory_space<vmem>>, vector<8x267xf32>,
    %c0_7 = arith.constant 0 : index
    %c0_8 = arith.constant 0 : index
    %c2 = arith.constant 2 : index
    %6 = vector.load %arg1[%c0_7, %c0_8, %c2] : memref<1x8x324xf32, #tpu.memory_space<vmem>>, vector<1x8x267xf32>
    %7 = vector.shape_cast %6 : vector<1x8x267xf32> to vector<8x267xf32>
    %c16 = arith.constant 16 : index
    %c0_9 = arith.constant 0 : index
    %8 = vector.load %arg20[%c16, %c0_9] : memref<128x267xf32, #tpu.memory_space<vmem>>, vector<8x267xf32>
    tpu.vector_store %arg20[%c16, %c0_9], %7 {strides = array<i32>} : memref<128x267xf32, #tpu.memory_space<vmem>>, vector<8x267xf32>,
    %c0_10 = arith.constant 0 : index
    %c0_11 = arith.constant 0 : index
    %c3 = arith.constant 3 : index
    %9 = vector.load %arg1[%c0_10, %c0_11, %c3] : memref<1x8x324xf32, #tpu.memory_space<vmem>>, vector<1x8x267xf32>
    %10 = vector.shape_cast %9 : vector<1x8x267xf32> to vector<8x267xf32>
    %c24 = arith.constant 24 : index
    %c0_12 = arith.constant 0 : index
    %11 = vector.load %arg20[%c24, %c0_12] : memref<128x267xf32, #tpu.memory_space<vmem>>, vector<8x267xf32>
    tpu.vector_store %arg20[%c24, %c0_12], %10 {strides = array<i32>} : memref<128x267xf32, #tpu.memory_space<vmem>>, vector<8x267xf32>,
    %c0_13 = arith.constant 0 : index
    %c0_14 = arith.constant 0 : index
    %c18 = arith.constant 18 : index
    %12 = vector.load %arg1[%c0_13, %c0_14, %c18] : memref<1x8x324xf32, #tpu.memory_space<vmem>>, vector<1x8x267xf32>
    %13 = vector.shape_cast %12 : vector<1x8x267xf32> to vector<8x267xf32>
    %c32 = arith.constant 32 : index
    %c0_15 = arith.constant 0 : index
    %14 = vector.load %arg20[%c32, %c0_15] : memref<128x267xf32, #tpu.memory_space<vmem>>, vector<8x267xf32>
    tpu.vector_store %arg20[%c32, %c0_15], %13 {strides = array<i32>} : memref<128x267xf32, #tpu.memory_space<vmem>>, vector<8x267xf32>,
    %c0_16 = arith.constant 0 : index
    %c0_17 = arith.constant 0 : index
    %c19 = arith.constant 19 : index
    %15 = vector.load %arg1[%c0_16, %c0_17, %c19] : memref<1x8x324xf32, #tpu.memory_space<vmem>>, vector<1x8x267xf32>
    %16 = vector.shape_cast %15 : vector<1x8x267xf32> to vector<8x267xf32>
    %c40 = arith.constant 40 : index
    %c0_18 = arith.constant 0 : index
    %17 = vector.load %arg20[%c40, %c0_18] : memref<128x267xf32, #tpu.memory_space<vmem>>, vector<8x267xf32>
    tpu.vector_store %arg20[%c40, %c0_18], %16 {strides = array<i32>} : memref<128x267xf32, #tpu.memory_space<vmem>>, vector<8x267xf32>,
    %c0_19 = arith.constant 0 : index
    %c0_20 = arith.constant 0 : index
    %c20 = arith.constant 20 : index
    %18 = vector.load %arg1[%c0_19, %c0_20, %c20] : memref<1x8x324xf32, #tpu.memory_space<vmem>>, vector<1x8x267xf32>
    %19 = vector.shape_cast %18 : vector<1x8x267xf32> to vector<8x267xf32>
    %c48 = arith.constant 48 : index
    %c0_21 = arith.constant 0 : index
    %20 = vector.load %arg20[%c48, %c0_21] : memref<128x267xf32, #tpu.memory_space<vmem>>, vector<8x267xf32>
    tpu.vector_store %arg20[%c48, %c0_21], %19 {strides = array<i32>} : memref<128x267xf32, #tpu.memory_space<vmem>>, vector<8x267xf32>,
    %c0_22 = arith.constant 0 : index
    %c0_23 = arith.constant 0 : index
    %c21 = arith.constant 21 : index
    %21 = vector.load %arg1[%c0_22, %c0_23, %c21] : memref<1x8x324xf32, #tpu.memory_space<vmem>>, vector<1x8x267xf32>
    %22 = vector.shape_cast %21 : vector<1x8x267xf32> to vector<8x267xf32>
    %c56 = arith.constant 56 : index
    %c0_24 = arith.constant 0 : index
    %23 = vector.load %arg20[%c56, %c0_24] : memref<128x267xf32, #tpu.memory_space<vmem>>, vector<8x267xf32>
    tpu.vector_store %arg20[%c56, %c0_24], %22 {strides = array<i32>} : memref<128x267xf32, #tpu.memory_space<vmem>>, vector<8x267xf32>,
    %c0_25 = arith.constant 0 : index
    %c0_26 = arith.constant 0 : index
    %c36 = arith.constant 36 : index
    %24 = vector.load %arg1[%c0_25, %c0_26, %c36] : memref<1x8x324xf32, #tpu.memory_space<vmem>>, vector<1x8x267xf32>
    %25 = vector.shape_cast %24 : vector<1x8x267xf32> to vector<8x267xf32>
    %c64 = arith.constant 64 : index
    %c0_27 = arith.constant 0 : index
    %26 = vector.load %arg20[%c64, %c0_27] : memref<128x267xf32, #tpu.memory_space<vmem>>, vector<8x267xf32>
    tpu.vector_store %arg20[%c64, %c0_27], %25 {strides = array<i32>} : memref<128x267xf32, #tpu.memory_space<vmem>>, vector<8x267xf32>,
    %c0_28 = arith.constant 0 : index
    %c0_29 = arith.constant 0 : index
    %c37 = arith.constant 37 : index
    %27 = vector.load %arg1[%c0_28, %c0_29, %c37] : memref<1x8x324xf32, #tpu.memory_space<vmem>>, vector<1x8x267xf32>
    %28 = vector.shape_cast %27 : vector<1x8x267xf32> to vector<8x267xf32>
    %c72 = arith.constant 72 : index
    %c0_30 = arith.constant 0 : index
    %29 = vector.load %arg20[%c72, %c0_30] : memref<128x267xf32, #tpu.memory_space<vmem>>, vector<8x267xf32>
    tpu.vector_store %arg20[%c72, %c0_30], %28 {strides = array<i32>} : memref<128x267xf32, #tpu.memory_space<vmem>>, vector<8x267xf32>,
    %c0_31 = arith.constant 0 : index
    %c0_32 = arith.constant 0 : index
    %c38 = arith.constant 38 : index
    %30 = vector.load %arg1[%c0_31, %c0_32, %c38] : memref<1x8x324xf32, #tpu.memory_space<vmem>>, vector<1x8x267xf32>
    %31 = vector.shape_cast %30 : vector<1x8x267xf32> to vector<8x267xf32>
    %c80 = arith.constant 80 : index
    %c0_33 = arith.constant 0 : index
    %32 = vector.load %arg20[%c80, %c0_33] : memref<128x267xf32, #tpu.memory_space<vmem>>, vector<8x267xf32>
    tpu.vector_store %arg20[%c80, %c0_33], %31 {strides = array<i32>} : memref<128x267xf32, #tpu.memory_space<vmem>>, vector<8x267xf32>,
    %c0_34 = arith.constant 0 : index
    %c0_35 = arith.constant 0 : index
    %c39 = arith.constant 39 : index
    %33 = vector.load %arg1[%c0_34, %c0_35, %c39] : memref<1x8x324xf32, #tpu.memory_space<vmem>>, vector<1x8x267xf32>
    %34 = vector.shape_cast %33 : vector<1x8x267xf32> to vector<8x267xf32>
    %c88 = arith.constant 88 : index
    %c0_36 = arith.constant 0 : index
    %35 = vector.load %arg20[%c88, %c0_36] : memref<128x267xf32, #tpu.memory_space<vmem>>, vector<8x267xf32>
    tpu.vector_store %arg20[%c88, %c0_36], %34 {strides = array<i32>} : memref<128x267xf32, #tpu.memory_space<vmem>>, vector<8x267xf32>,
    %c0_37 = arith.constant 0 : index
    %c0_38 = arith.constant 0 : index
    %c54 = arith.constant 54 : index
    %36 = vector.load %arg1[%c0_37, %c0_38, %c54] : memref<1x8x324xf32, #tpu.memory_space<vmem>>, vector<1x8x267xf32>
    %37 = vector.shape_cast %36 : vector<1x8x267xf32> to vector<8x267xf32>
    %c96 = arith.constant 96 : index
    %c0_39 = arith.constant 0 : index
    %38 = vector.load %arg20[%c96, %c0_39] : memref<128x267xf32, #tpu.memory_space<vmem>>, vector<8x267xf32>
    tpu.vector_store %arg20[%c96, %c0_39], %37 {strides = array<i32>} : memref<128x267xf32, #tpu.memory_space<vmem>>, vector<8x267xf32>,
    %c0_40 = arith.constant 0 : index
    %c0_41 = arith.constant 0 : index
    %c55 = arith.constant 55 : index
    %39 = vector.load %arg1[%c0_40, %c0_41, %c55] : memref<1x8x324xf32, #tpu.memory_space<vmem>>, vector<1x8x267xf32>
    %40 = vector.shape_cast %39 : vector<1x8x267xf32> to vector<8x267xf32>
    %c104 = arith.constant 104 : index
    %c0_42 = arith.constant 0 : index
    %41 = vector.load %arg20[%c104, %c0_42] : memref<128x267xf32, #tpu.memory_space<vmem>>, vector<8x267xf32>
    tpu.vector_store %arg20[%c104, %c0_42], %40 {strides = array<i32>} : memref<128x267xf32, #tpu.memory_space<vmem>>, vector<8x267xf32>,
    %c0_43 = arith.constant 0 : index
    %c0_44 = arith.constant 0 : index
    %c56_45 = arith.constant 56 : index
    %42 = vector.load %arg1[%c0_43, %c0_44, %c56_45] : memref<1x8x324xf32, #tpu.memory_space<vmem>>, vector<1x8x267xf32>
    %43 = vector.shape_cast %42 : vector<1x8x267xf32> to vector<8x267xf32>
    %c112 = arith.constant 112 : index
    %c0_46 = arith.constant 0 : index
    %44 = vector.load %arg20[%c112, %c0_46] : memref<128x267xf32, #tpu.memory_space<vmem>>, vector<8x267xf32>
    tpu.vector_store %arg20[%c112, %c0_46], %43 {strides = array<i32>} : memref<128x267xf32, #tpu.memory_space<vmem>>, vector<8x267xf32>,
    %c0_47 = arith.constant 0 : index
    %c0_48 = arith.constant 0 : index
    %c57 = arith.constant 57 : index
    %45 = vector.load %arg1[%c0_47, %c0_48, %c57] : memref<1x8x324xf32, #tpu.memory_space<vmem>>, vector<1x8x267xf32>
    %46 = vector.shape_cast %45 : vector<1x8x267xf32> to vector<8x267xf32>
    %c120 = arith.constant 120 : index
    %c0_49 = arith.constant 0 : index
    %47 = vector.load %arg20[%c120, %c0_49] : memref<128x267xf32, #tpu.memory_space<vmem>>, vector<8x267xf32>
    tpu.vector_store %arg20[%c120, %c0_49], %46 {strides = array<i32>} : memref<128x267xf32, #tpu.memory_space<vmem>>, vector<8x267xf32>,
    %c0_50 = arith.constant 0 : index
    %c0_51 = arith.constant 0 : index
    %48 = vector.load %arg2[%c0_50, %c0_51] : memref<8x128xbf16, #tpu.memory_space<vmem>>, vector<8x128xbf16>
    %c0_52 = arith.constant 0 : index
    %c0_53 = arith.constant 0 : index
    %49 = vector.load %arg20[%c0_52, %c0_53] : memref<128x267xf32, #tpu.memory_space<vmem>>, vector<128x267xf32>
    %50 = arith.truncf %49 : vector<128x267xf32> to vector<128x267xbf16>
    %cst = arith.constant dense<0.000000e+00> : vector<8x267xf32>
    %51 = tpu.matmul %48, %50, %cst {dimension_numbers = #tpu.dot_dimension_numbers<[1], [0], [0], [1], [0, 0, 1, 1], [], []>} : vector<8x128xbf16>, vector<128x267xbf16>, vector<8x267xf32> -> vector<8x267xf32>
    %c0_54 = arith.constant 0 : index
    %c0_55 = arith.constant 0 : index
    %52 = vector.load %arg3[%c0_54, %c0_55] : memref<8x1xf32, #tpu.memory_space<vmem>>, vector<8x1xf32>
    %53 = vector.broadcast %52 : vector<8x1xf32> to vector<8x267xf32>
    %54 = arith.addf %51, %53 : vector<8x267xf32>
    %cst_56 = arith.constant 0.000000e+00 : f32
    %55 = vector.broadcast %cst_56 : f32 to vector<8x267xf32>
    %56 = arith.cmpf oge, %54, %55 : vector<8x267xf32>
    %cst_57 = arith.constant 2.000000e-01 : f32
    %57 = vector.broadcast %cst_57 : f32 to vector<8x267xf32>
    %58 = arith.mulf %57, %54 : vector<8x267xf32>
    %59 = arith.select %56, %54, %58 : vector<8x267xi1>, vector<8x267xf32>
    %60 = arith.truncf %59 : vector<8x267xf32> to vector<8x267xbf16>
    %c0_58 = arith.constant 0 : index
    %c0_59 = arith.constant 0 : index
    %61 = vector.load %arg4[%c0_58, %c0_59] : memref<267x81xbf16, #tpu.memory_space<vmem>>, vector<267x81xbf16>
    %cst_60 = arith.constant dense<0.000000e+00> : vector<8x81xf32>
    %62 = tpu.matmul %60, %61, %cst_60 {dimension_numbers = #tpu.dot_dimension_numbers<[1], [0], [0], [1], [0, 0, 1, 1], [], []>} : vector<8x267xbf16>, vector<267x81xbf16>, vector<8x81xf32> -> vector<8x81xf32>
    %c0_61 = arith.constant 0 : index
    %c0_62 = arith.constant 0 : index
    %63 = vector.load %arg23[%c0_61, %c0_62] : memref<8x81xf32, #tpu.memory_space<vmem>>, vector<8x81xf32>
    tpu.vector_store %arg23[%c0_61, %c0_62], %62 {strides = array<i32>} : memref<8x81xf32, #tpu.memory_space<vmem>>, vector<8x81xf32>,
    %c0_63 = arith.constant 0 : index
    %c0_64 = arith.constant 0 : index
    %64 = vector.load %arg23[%c0_63, %c0_64] : memref<8x81xf32, #tpu.memory_space<vmem>>, vector<8x51xf32>
    %c0_65 = arith.constant 0 : index
    %c0_66 = arith.constant 0 : index
    %65 = vector.load %arg21[%c0_65, %c0_66] : memref<128x51xf32, #tpu.memory_space<vmem>>, vector<8x51xf32>
    tpu.vector_store %arg21[%c0_65, %c0_66], %64 {strides = array<i32>} : memref<128x51xf32, #tpu.memory_space<vmem>>, vector<8x51xf32>,
    %c0_67 = arith.constant 0 : index
    %c1_68 = arith.constant 1 : index
    %66 = vector.load %arg23[%c0_67, %c1_68] : memref<8x81xf32, #tpu.memory_space<vmem>>, vector<8x51xf32>
    %c8_69 = arith.constant 8 : index
    %c0_70 = arith.constant 0 : index
    %67 = vector.load %arg21[%c8_69, %c0_70] : memref<128x51xf32, #tpu.memory_space<vmem>>, vector<8x51xf32>
    tpu.vector_store %arg21[%c8_69, %c0_70], %66 {strides = array<i32>} : memref<128x51xf32, #tpu.memory_space<vmem>>, vector<8x51xf32>,
    %c0_71 = arith.constant 0 : index
    %c2_72 = arith.constant 2 : index
    %68 = vector.load %arg23[%c0_71, %c2_72] : memref<8x81xf32, #tpu.memory_space<vmem>>, vector<8x51xf32>
    %c16_73 = arith.constant 16 : index
    %c0_74 = arith.constant 0 : index
    %69 = vector.load %arg21[%c16_73, %c0_74] : memref<128x51xf32, #tpu.memory_space<vmem>>, vector<8x51xf32>
    tpu.vector_store %arg21[%c16_73, %c0_74], %68 {strides = array<i32>} : memref<128x51xf32, #tpu.memory_space<vmem>>, vector<8x51xf32>,
    %c0_75 = arith.constant 0 : index
    %c3_76 = arith.constant 3 : index
    %70 = vector.load %arg23[%c0_75, %c3_76] : memref<8x81xf32, #tpu.memory_space<vmem>>, vector<8x51xf32>
    %c24_77 = arith.constant 24 : index
    %c0_78 = arith.constant 0 : index
    %71 = vector.load %arg21[%c24_77, %c0_78] : memref<128x51xf32, #tpu.memory_space<vmem>>, vector<8x51xf32>
    tpu.vector_store %arg21[%c24_77, %c0_78], %70 {strides = array<i32>} : memref<128x51xf32, #tpu.memory_space<vmem>>, vector<8x51xf32>,
    %c0_79 = arith.constant 0 : index
    %c9 = arith.constant 9 : index
    %72 = vector.load %arg23[%c0_79, %c9] : memref<8x81xf32, #tpu.memory_space<vmem>>, vector<8x51xf32>
    %c32_80 = arith.constant 32 : index
    %c0_81 = arith.constant 0 : index
    %73 = vector.load %arg21[%c32_80, %c0_81] : memref<128x51xf32, #tpu.memory_space<vmem>>, vector<8x51xf32>
    tpu.vector_store %arg21[%c32_80, %c0_81], %72 {strides = array<i32>} : memref<128x51xf32, #tpu.memory_space<vmem>>, vector<8x51xf32>,
    %c0_82 = arith.constant 0 : index
    %c10 = arith.constant 10 : index
    %74 = vector.load %arg23[%c0_82, %c10] : memref<8x81xf32, #tpu.memory_space<vmem>>, vector<8x51xf32>
    %c40_83 = arith.constant 40 : index
    %c0_84 = arith.constant 0 : index
    %75 = vector.load %arg21[%c40_83, %c0_84] : memref<128x51xf32, #tpu.memory_space<vmem>>, vector<8x51xf32>
    tpu.vector_store %arg21[%c40_83, %c0_84], %74 {strides = array<i32>} : memref<128x51xf32, #tpu.memory_space<vmem>>, vector<8x51xf32>,
    %c0_85 = arith.constant 0 : index
    %c11 = arith.constant 11 : index
    %76 = vector.load %arg23[%c0_85, %c11] : memref<8x81xf32, #tpu.memory_space<vmem>>, vector<8x51xf32>
    %c48_86 = arith.constant 48 : index
    %c0_87 = arith.constant 0 : index
    %77 = vector.load %arg21[%c48_86, %c0_87] : memref<128x51xf32, #tpu.memory_space<vmem>>, vector<8x51xf32>
    tpu.vector_store %arg21[%c48_86, %c0_87], %76 {strides = array<i32>} : memref<128x51xf32, #tpu.memory_space<vmem>>, vector<8x51xf32>,
    %c0_88 = arith.constant 0 : index
    %c12 = arith.constant 12 : index
    %78 = vector.load %arg23[%c0_88, %c12] : memref<8x81xf32, #tpu.memory_space<vmem>>, vector<8x51xf32>
    %c56_89 = arith.constant 56 : index
    %c0_90 = arith.constant 0 : index
    %79 = vector.load %arg21[%c56_89, %c0_90] : memref<128x51xf32, #tpu.memory_space<vmem>>, vector<8x51xf32>
    tpu.vector_store %arg21[%c56_89, %c0_90], %78 {strides = array<i32>} : memref<128x51xf32, #tpu.memory_space<vmem>>, vector<8x51xf32>,
    %c0_91 = arith.constant 0 : index
    %c18_92 = arith.constant 18 : index
    %80 = vector.load %arg23[%c0_91, %c18_92] : memref<8x81xf32, #tpu.memory_space<vmem>>, vector<8x51xf32>
    %c64_93 = arith.constant 64 : index
    %c0_94 = arith.constant 0 : index
    %81 = vector.load %arg21[%c64_93, %c0_94] : memref<128x51xf32, #tpu.memory_space<vmem>>, vector<8x51xf32>
    tpu.vector_store %arg21[%c64_93, %c0_94], %80 {strides = array<i32>} : memref<128x51xf32, #tpu.memory_space<vmem>>, vector<8x51xf32>,
    %c0_95 = arith.constant 0 : index
    %c19_96 = arith.constant 19 : index
    %82 = vector.load %arg23[%c0_95, %c19_96] : memref<8x81xf32, #tpu.memory_space<vmem>>, vector<8x51xf32>
    %c72_97 = arith.constant 72 : index
    %c0_98 = arith.constant 0 : index
    %83 = vector.load %arg21[%c72_97, %c0_98] : memref<128x51xf32, #tpu.memory_space<vmem>>, vector<8x51xf32>
    tpu.vector_store %arg21[%c72_97, %c0_98], %82 {strides = array<i32>} : memref<128x51xf32, #tpu.memory_space<vmem>>, vector<8x51xf32>,
    %c0_99 = arith.constant 0 : index
    %c20_100 = arith.constant 20 : index
    %84 = vector.load %arg23[%c0_99, %c20_100] : memref<8x81xf32, #tpu.memory_space<vmem>>, vector<8x51xf32>
    %c80_101 = arith.constant 80 : index
    %c0_102 = arith.constant 0 : index
    %85 = vector.load %arg21[%c80_101, %c0_102] : memref<128x51xf32, #tpu.memory_space<vmem>>, vector<8x51xf32>
    tpu.vector_store %arg21[%c80_101, %c0_102], %84 {strides = array<i32>} : memref<128x51xf32, #tpu.memory_space<vmem>>, vector<8x51xf32>,
    %c0_103 = arith.constant 0 : index
    %c21_104 = arith.constant 21 : index
    %86 = vector.load %arg23[%c0_103, %c21_104] : memref<8x81xf32, #tpu.memory_space<vmem>>, vector<8x51xf32>
    %c88_105 = arith.constant 88 : index
    %c0_106 = arith.constant 0 : index
    %87 = vector.load %arg21[%c88_105, %c0_106] : memref<128x51xf32, #tpu.memory_space<vmem>>, vector<8x51xf32>
    tpu.vector_store %arg21[%c88_105, %c0_106], %86 {strides = array<i32>} : memref<128x51xf32, #tpu.memory_space<vmem>>, vector<8x51xf32>,
    %c0_107 = arith.constant 0 : index
    %c27 = arith.constant 27 : index
    %88 = vector.load %arg23[%c0_107, %c27] : memref<8x81xf32, #tpu.memory_space<vmem>>, vector<8x51xf32>
    %c96_108 = arith.constant 96 : index
    %c0_109 = arith.constant 0 : index
    %89 = vector.load %arg21[%c96_108, %c0_109] : memref<128x51xf32, #tpu.memory_space<vmem>>, vector<8x51xf32>
    tpu.vector_store %arg21[%c96_108, %c0_109], %88 {strides = array<i32>} : memref<128x51xf32, #tpu.memory_space<vmem>>, vector<8x51xf32>,
    %c0_110 = arith.constant 0 : index
    %c28 = arith.constant 28 : index
    %90 = vector.load %arg23[%c0_110, %c28] : memref<8x81xf32, #tpu.memory_space<vmem>>, vector<8x51xf32>
    %c104_111 = arith.constant 104 : index
    %c0_112 = arith.constant 0 : index
    %91 = vector.load %arg21[%c104_111, %c0_112] : memref<128x51xf32, #tpu.memory_space<vmem>>, vector<8x51xf32>
    tpu.vector_store %arg21[%c104_111, %c0_112], %90 {strides = array<i32>} : memref<128x51xf32, #tpu.memory_space<vmem>>, vector<8x51xf32>,
    %c0_113 = arith.constant 0 : index
    %c29 = arith.constant 29 : index
    %92 = vector.load %arg23[%c0_113, %c29] : memref<8x81xf32, #tpu.memory_space<vmem>>, vector<8x51xf32>
    %c112_114 = arith.constant 112 : index
    %c0_115 = arith.constant 0 : index
    %93 = vector.load %arg21[%c112_114, %c0_115] : memref<128x51xf32, #tpu.memory_space<vmem>>, vector<8x51xf32>
    tpu.vector_store %arg21[%c112_114, %c0_115], %92 {strides = array<i32>} : memref<128x51xf32, #tpu.memory_space<vmem>>, vector<8x51xf32>,
    %c0_116 = arith.constant 0 : index
    %c30 = arith.constant 30 : index
    %94 = vector.load %arg23[%c0_116, %c30] : memref<8x81xf32, #tpu.memory_space<vmem>>, vector<8x51xf32>
    %c120_117 = arith.constant 120 : index
    %c0_118 = arith.constant 0 : index
    %95 = vector.load %arg21[%c120_117, %c0_118] : memref<128x51xf32, #tpu.memory_space<vmem>>, vector<8x51xf32>
    tpu.vector_store %arg21[%c120_117, %c0_118], %94 {strides = array<i32>} : memref<128x51xf32, #tpu.memory_space<vmem>>, vector<8x51xf32>,
    %c0_119 = arith.constant 0 : index
    %c0_120 = arith.constant 0 : index
    %96 = vector.load %arg5[%c0_119, %c0_120] : memref<16x128xbf16, #tpu.memory_space<vmem>>, vector<16x128xbf16>
    %c0_121 = arith.constant 0 : index
    %c0_122 = arith.constant 0 : index
    %97 = vector.load %arg21[%c0_121, %c0_122] : memref<128x51xf32, #tpu.memory_space<vmem>>, vector<128x51xf32>
    %98 = arith.truncf %97 : vector<128x51xf32> to vector<128x51xbf16>
    %cst_123 = arith.constant dense<0.000000e+00> : vector<16x51xf32>
    %99 = tpu.matmul %96, %98, %cst_123 {dimension_numbers = #tpu.dot_dimension_numbers<[1], [0], [0], [1], [0, 0, 1, 1], [], []>} : vector<16x128xbf16>, vector<128x51xbf16>, vector<16x51xf32> -> vector<16x51xf32>
    %c0_124 = arith.constant 0 : index
    %c0_125 = arith.constant 0 : index
    %100 = vector.load %arg6[%c0_124, %c0_125] : memref<16x1xf32, #tpu.memory_space<vmem>>, vector<16x1xf32>
    %101 = vector.broadcast %100 : vector<16x1xf32> to vector<16x51xf32>
    %102 = arith.addf %99, %101 : vector<16x51xf32>
    %c0_126 = arith.constant 0 : index
    %c0_127 = arith.constant 0 : index
    %103 = vector.load %arg9[%c0_126, %c0_127] : memref<1x51xf32, #tpu.memory_space<vmem>>, vector<1x51xf32>
    %104 = vector.broadcast %103 : vector<1x51xf32> to vector<16x51xf32>
    %105 = arith.mulf %102, %104 : vector<16x51xf32>
    %cst_128 = arith.constant dense<0.000000e+00> : vector<16xf32>
    %106 = vector.multi_reduction <add>, %105, %cst_128 [1] : vector<16x51xf32> to vector<16xf32>
    %107 = vector.shape_cast %106 : vector<16xf32> to vector<16x1xf32>
    %cst_129 = arith.constant 0.027777778 : f32
    %108 = vector.broadcast %cst_129 : f32 to vector<16x1xf32>
    %109 = arith.mulf %107, %108 : vector<16x1xf32>
    %110 = vector.broadcast %109 : vector<16x1xf32> to vector<16x51xf32>
    %111 = arith.subf %102, %110 : vector<16x51xf32>
    %112 = arith.mulf %111, %111 : vector<16x51xf32>
    %113 = vector.broadcast %103 : vector<1x51xf32> to vector<16x51xf32>
    %114 = arith.mulf %112, %113 : vector<16x51xf32>
    %cst_130 = arith.constant dense<0.000000e+00> : vector<16xf32>
    %115 = vector.multi_reduction <add>, %114, %cst_130 [1] : vector<16x51xf32> to vector<16xf32>
    %116 = vector.shape_cast %115 : vector<16xf32> to vector<16x1xf32>
    %cst_131 = arith.constant 0.027777778 : f32
    %117 = vector.broadcast %cst_131 : f32 to vector<16x1xf32>
    %118 = arith.mulf %116, %117 : vector<16x1xf32>
    %cst_132 = arith.constant 9.99999974E-6 : f32
    %119 = vector.broadcast %cst_132 : f32 to vector<16x1xf32>
    %120 = arith.addf %118, %119 : vector<16x1xf32>
    %121 = math.rsqrt %120 : vector<16x1xf32>
    %122 = vector.broadcast %121 : vector<16x1xf32> to vector<16x51xf32>
    %123 = arith.mulf %111, %122 : vector<16x51xf32>
    %c0_133 = arith.constant 0 : index
    %c0_134 = arith.constant 0 : index
    %124 = vector.load %arg7[%c0_133, %c0_134] : memref<16x1xf32, #tpu.memory_space<vmem>>, vector<16x1xf32>
    %125 = vector.broadcast %124 : vector<16x1xf32> to vector<16x51xf32>
    %126 = arith.mulf %123, %125 : vector<16x51xf32>
    %c0_135 = arith.constant 0 : index
    %c0_136 = arith.constant 0 : index
    %127 = vector.load %arg8[%c0_135, %c0_136] : memref<16x1xf32, #tpu.memory_space<vmem>>, vector<16x1xf32>
    %128 = vector.broadcast %127 : vector<16x1xf32> to vector<16x51xf32>
    %129 = arith.addf %126, %128 : vector<16x51xf32>
    %cst_137 = arith.constant 0.000000e+00 : f32
    %130 = vector.broadcast %cst_137 : f32 to vector<16x51xf32>
    %131 = arith.cmpf oge, %129, %130 : vector<16x51xf32>
    %cst_138 = arith.constant 2.000000e-01 : f32
    %132 = vector.broadcast %cst_138 : f32 to vector<16x51xf32>
    %133 = arith.mulf %132, %129 : vector<16x51xf32>
    %134 = arith.select %131, %129, %133 : vector<16x51xi1>, vector<16x51xf32>
    %135 = arith.truncf %134 : vector<16x51xf32> to vector<16x51xbf16>
    %c0_139 = arith.constant 0 : index
    %c0_140 = arith.constant 0 : index
    %136 = vector.load %arg10[%c0_139, %c0_140] : memref<51x25xbf16, #tpu.memory_space<vmem>>, vector<51x25xbf16>
    %cst_141 = arith.constant dense<0.000000e+00> : vector<16x25xf32>
    %137 = tpu.matmul %135, %136, %cst_141 {dimension_numbers = #tpu.dot_dimension_numbers<[1], [0], [0], [1], [0, 0, 1, 1], [], []>} : vector<16x51xbf16>, vector<51x25xbf16>, vector<16x25xf32> -> vector<16x25xf32>
    %c0_142 = arith.constant 0 : index
    %c0_143 = arith.constant 0 : index
    %138 = vector.load %arg24[%c0_142, %c0_143] : memref<16x25xf32, #tpu.memory_space<vmem>>, vector<16x25xf32>
    tpu.vector_store %arg24[%c0_142, %c0_143], %137 {strides = array<i32>} : memref<16x25xf32, #tpu.memory_space<vmem>>, vector<16x25xf32>,
    %c0_144 = arith.constant 0 : index
    %c0_145 = arith.constant 0 : index
    %139 = vector.load %arg24[%c0_144, %c0_145] : memref<16x25xf32, #tpu.memory_space<vmem>>, vector<16x7xf32>
    %c0_146 = arith.constant 0 : index
    %c0_147 = arith.constant 0 : index
    %140 = vector.load %arg22[%c0_146, %c0_147] : memref<256x7xf32, #tpu.memory_space<vmem>>, vector<16x7xf32>
    tpu.vector_store %arg22[%c0_146, %c0_147], %139 {strides = array<i32>} : memref<256x7xf32, #tpu.memory_space<vmem>>, vector<16x7xf32>,
    %c0_148 = arith.constant 0 : index
    %c1_149 = arith.constant 1 : index
    %141 = vector.load %arg24[%c0_148, %c1_149] : memref<16x25xf32, #tpu.memory_space<vmem>>, vector<16x7xf32>
    %c16_150 = arith.constant 16 : index
    %c0_151 = arith.constant 0 : index
    %142 = vector.load %arg22[%c16_150, %c0_151] : memref<256x7xf32, #tpu.memory_space<vmem>>, vector<16x7xf32>
    tpu.vector_store %arg22[%c16_150, %c0_151], %141 {strides = array<i32>} : memref<256x7xf32, #tpu.memory_space<vmem>>, vector<16x7xf32>,
    %c0_152 = arith.constant 0 : index
    %c2_153 = arith.constant 2 : index
    %143 = vector.load %arg24[%c0_152, %c2_153] : memref<16x25xf32, #tpu.memory_space<vmem>>, vector<16x7xf32>
    %c32_154 = arith.constant 32 : index
    %c0_155 = arith.constant 0 : index
    %144 = vector.load %arg22[%c32_154, %c0_155] : memref<256x7xf32, #tpu.memory_space<vmem>>, vector<16x7xf32>
    tpu.vector_store %arg22[%c32_154, %c0_155], %143 {strides = array<i32>} : memref<256x7xf32, #tpu.memory_space<vmem>>, vector<16x7xf32>,
    %c0_156 = arith.constant 0 : index
    %c3_157 = arith.constant 3 : index
    %145 = vector.load %arg24[%c0_156, %c3_157] : memref<16x25xf32, #tpu.memory_space<vmem>>, vector<16x7xf32>
    %c48_158 = arith.constant 48 : index
    %c0_159 = arith.constant 0 : index
    %146 = vector.load %arg22[%c48_158, %c0_159] : memref<256x7xf32, #tpu.memory_space<vmem>>, vector<16x7xf32>
    tpu.vector_store %arg22[%c48_158, %c0_159], %145 {strides = array<i32>} : memref<256x7xf32, #tpu.memory_space<vmem>>, vector<16x7xf32>,
    %c0_160 = arith.constant 0 : index
    %c5 = arith.constant 5 : index
    %147 = vector.load %arg24[%c0_160, %c5] : memref<16x25xf32, #tpu.memory_space<vmem>>, vector<16x7xf32>
    %c64_161 = arith.constant 64 : index
    %c0_162 = arith.constant 0 : index
    %148 = vector.load %arg22[%c64_161, %c0_162] : memref<256x7xf32, #tpu.memory_space<vmem>>, vector<16x7xf32>
    tpu.vector_store %arg22[%c64_161, %c0_162], %147 {strides = array<i32>} : memref<256x7xf32, #tpu.memory_space<vmem>>, vector<16x7xf32>,
    %c0_163 = arith.constant 0 : index
    %c6 = arith.constant 6 : index
    %149 = vector.load %arg24[%c0_163, %c6] : memref<16x25xf32, #tpu.memory_space<vmem>>, vector<16x7xf32>
    %c80_164 = arith.constant 80 : index
    %c0_165 = arith.constant 0 : index
    %150 = vector.load %arg22[%c80_164, %c0_165] : memref<256x7xf32, #tpu.memory_space<vmem>>, vector<16x7xf32>
    tpu.vector_store %arg22[%c80_164, %c0_165], %149 {strides = array<i32>} : memref<256x7xf32, #tpu.memory_space<vmem>>, vector<16x7xf32>,
    %c0_166 = arith.constant 0 : index
    %c7 = arith.constant 7 : index
    %151 = vector.load %arg24[%c0_166, %c7] : memref<16x25xf32, #tpu.memory_space<vmem>>, vector<16x7xf32>
    %c96_167 = arith.constant 96 : index
    %c0_168 = arith.constant 0 : index
    %152 = vector.load %arg22[%c96_167, %c0_168] : memref<256x7xf32, #tpu.memory_space<vmem>>, vector<16x7xf32>
    tpu.vector_store %arg22[%c96_167, %c0_168], %151 {strides = array<i32>} : memref<256x7xf32, #tpu.memory_space<vmem>>, vector<16x7xf32>,
    %c0_169 = arith.constant 0 : index
    %c8_170 = arith.constant 8 : index
    %153 = vector.load %arg24[%c0_169, %c8_170] : memref<16x25xf32, #tpu.memory_space<vmem>>, vector<16x7xf32>
    %c112_171 = arith.constant 112 : index
    %c0_172 = arith.constant 0 : index
    %154 = vector.load %arg22[%c112_171, %c0_172] : memref<256x7xf32, #tpu.memory_space<vmem>>, vector<16x7xf32>
    tpu.vector_store %arg22[%c112_171, %c0_172], %153 {strides = array<i32>} : memref<256x7xf32, #tpu.memory_space<vmem>>, vector<16x7xf32>,
    %c0_173 = arith.constant 0 : index
    %c10_174 = arith.constant 10 : index
    %155 = vector.load %arg24[%c0_173, %c10_174] : memref<16x25xf32, #tpu.memory_space<vmem>>, vector<16x7xf32>
    %c128 = arith.constant 128 : index
    %c0_175 = arith.constant 0 : index
    %156 = vector.load %arg22[%c128, %c0_175] : memref<256x7xf32, #tpu.memory_space<vmem>>, vector<16x7xf32>
    tpu.vector_store %arg22[%c128, %c0_175], %155 {strides = array<i32>} : memref<256x7xf32, #tpu.memory_space<vmem>>, vector<16x7xf32>,
    %c0_176 = arith.constant 0 : index
    %c11_177 = arith.constant 11 : index
    %157 = vector.load %arg24[%c0_176, %c11_177] : memref<16x25xf32, #tpu.memory_space<vmem>>, vector<16x7xf32>
    %c144 = arith.constant 144 : index
    %c0_178 = arith.constant 0 : index
    %158 = vector.load %arg22[%c144, %c0_178] : memref<256x7xf32, #tpu.memory_space<vmem>>, vector<16x7xf32>
    tpu.vector_store %arg22[%c144, %c0_178], %157 {strides = array<i32>} : memref<256x7xf32, #tpu.memory_space<vmem>>, vector<16x7xf32>,
    %c0_179 = arith.constant 0 : index
    %c12_180 = arith.constant 12 : index
    %159 = vector.load %arg24[%c0_179, %c12_180] : memref<16x25xf32, #tpu.memory_space<vmem>>, vector<16x7xf32>
    %c160 = arith.constant 160 : index
    %c0_181 = arith.constant 0 : index
    %160 = vector.load %arg22[%c160, %c0_181] : memref<256x7xf32, #tpu.memory_space<vmem>>, vector<16x7xf32>
    tpu.vector_store %arg22[%c160, %c0_181], %159 {strides = array<i32>} : memref<256x7xf32, #tpu.memory_space<vmem>>, vector<16x7xf32>,
    %c0_182 = arith.constant 0 : index
    %c13 = arith.constant 13 : index
    %161 = vector.load %arg24[%c0_182, %c13] : memref<16x25xf32, #tpu.memory_space<vmem>>, vector<16x7xf32>
    %c176 = arith.constant 176 : index
    %c0_183 = arith.constant 0 : index
    %162 = vector.load %arg22[%c176, %c0_183] : memref<256x7xf32, #tpu.memory_space<vmem>>, vector<16x7xf32>
    tpu.vector_store %arg22[%c176, %c0_183], %161 {strides = array<i32>} : memref<256x7xf32, #tpu.memory_space<vmem>>, vector<16x7xf32>,
    %c0_184 = arith.constant 0 : index
    %c15 = arith.constant 15 : index
    %163 = vector.load %arg24[%c0_184, %c15] : memref<16x25xf32, #tpu.memory_space<vmem>>, vector<16x7xf32>
    %c192 = arith.constant 192 : index
    %c0_185 = arith.constant 0 : index
    %164 = vector.load %arg22[%c192, %c0_185] : memref<256x7xf32, #tpu.memory_space<vmem>>, vector<16x7xf32>
    tpu.vector_store %arg22[%c192, %c0_185], %163 {strides = array<i32>} : memref<256x7xf32, #tpu.memory_space<vmem>>, vector<16x7xf32>,
    %c0_186 = arith.constant 0 : index
    %c16_187 = arith.constant 16 : index
    %165 = vector.load %arg24[%c0_186, %c16_187] : memref<16x25xf32, #tpu.memory_space<vmem>>, vector<16x7xf32>
    %c208 = arith.constant 208 : index
    %c0_188 = arith.constant 0 : index
    %166 = vector.load %arg22[%c208, %c0_188] : memref<256x7xf32, #tpu.memory_space<vmem>>, vector<16x7xf32>
    tpu.vector_store %arg22[%c208, %c0_188], %165 {strides = array<i32>} : memref<256x7xf32, #tpu.memory_space<vmem>>, vector<16x7xf32>,
    %c0_189 = arith.constant 0 : index
    %c17 = arith.constant 17 : index
    %167 = vector.load %arg24[%c0_189, %c17] : memref<16x25xf32, #tpu.memory_space<vmem>>, vector<16x7xf32>
    %c224 = arith.constant 224 : index
    %c0_190 = arith.constant 0 : index
    %168 = vector.load %arg22[%c224, %c0_190] : memref<256x7xf32, #tpu.memory_space<vmem>>, vector<16x7xf32>
    tpu.vector_store %arg22[%c224, %c0_190], %167 {strides = array<i32>} : memref<256x7xf32, #tpu.memory_space<vmem>>, vector<16x7xf32>,
    %c0_191 = arith.constant 0 : index
    %c18_192 = arith.constant 18 : index
    %169 = vector.load %arg24[%c0_191, %c18_192] : memref<16x25xf32, #tpu.memory_space<vmem>>, vector<16x7xf32>
    %c240 = arith.constant 240 : index
    %c0_193 = arith.constant 0 : index
    %170 = vector.load %arg22[%c240, %c0_193] : memref<256x7xf32, #tpu.memory_space<vmem>>, vector<16x7xf32>
    tpu.vector_store %arg22[%c240, %c0_193], %169 {strides = array<i32>} : memref<256x7xf32, #tpu.memory_space<vmem>>, vector<16x7xf32>,
    %c0_194 = arith.constant 0 : index
    %c0_195 = arith.constant 0 : index
    %171 = vector.load %arg11[%c0_194, %c0_195] : memref<32x256xbf16, #tpu.memory_space<vmem>>, vector<32x256xbf16>
    %c0_196 = arith.constant 0 : index
    %c0_197 = arith.constant 0 : index
    %172 = vector.load %arg22[%c0_196, %c0_197] : memref<256x7xf32, #tpu.memory_space<vmem>>, vector<256x7xf32>
    %173 = arith.truncf %172 : vector<256x7xf32> to vector<256x7xbf16>
    %cst_198 = arith.constant dense<0.000000e+00> : vector<32x7xf32>
    %174 = tpu.matmul %171, %173, %cst_198 {dimension_numbers = #tpu.dot_dimension_numbers<[1], [0], [0], [1], [0, 0, 1, 1], [], []>} : vector<32x256xbf16>, vector<256x7xbf16>, vector<32x7xf32> -> vector<32x7xf32>
    %c0_199 = arith.constant 0 : index
    %c0_200 = arith.constant 0 : index
    %175 = vector.load %arg12[%c0_199, %c0_200] : memref<32x1xf32, #tpu.memory_space<vmem>>, vector<32x1xf32>
    %176 = vector.broadcast %175 : vector<32x1xf32> to vector<32x7xf32>
    %177 = arith.addf %174, %176 : vector<32x7xf32>
    %c0_201 = arith.constant 0 : index
    %c0_202 = arith.constant 0 : index
    %178 = vector.load %arg15[%c0_201, %c0_202] : memref<1x7xf32, #tpu.memory_space<vmem>>, vector<1x7xf32>
    %179 = vector.broadcast %178 : vector<1x7xf32> to vector<32x7xf32>
    %180 = arith.mulf %177, %179 : vector<32x7xf32>
    %cst_203 = arith.constant dense<0.000000e+00> : vector<32xf32>
    %181 = vector.multi_reduction <add>, %180, %cst_203 [1] : vector<32x7xf32> to vector<32xf32>
    %182 = vector.shape_cast %181 : vector<32xf32> to vector<32x1xf32>
    %cst_204 = arith.constant 2.500000e-01 : f32
    %183 = vector.broadcast %cst_204 : f32 to vector<32x1xf32>
    %184 = arith.mulf %182, %183 : vector<32x1xf32>
    %185 = vector.broadcast %184 : vector<32x1xf32> to vector<32x7xf32>
    %186 = arith.subf %177, %185 : vector<32x7xf32>
    %187 = arith.mulf %186, %186 : vector<32x7xf32>
    %188 = vector.broadcast %178 : vector<1x7xf32> to vector<32x7xf32>
    %189 = arith.mulf %187, %188 : vector<32x7xf32>
    %cst_205 = arith.constant dense<0.000000e+00> : vector<32xf32>
    %190 = vector.multi_reduction <add>, %189, %cst_205 [1] : vector<32x7xf32> to vector<32xf32>
    %191 = vector.shape_cast %190 : vector<32xf32> to vector<32x1xf32>
    %cst_206 = arith.constant 2.500000e-01 : f32
    %192 = vector.broadcast %cst_206 : f32 to vector<32x1xf32>
    %193 = arith.mulf %191, %192 : vector<32x1xf32>
    %cst_207 = arith.constant 9.99999974E-6 : f32
    %194 = vector.broadcast %cst_207 : f32 to vector<32x1xf32>
    %195 = arith.addf %193, %194 : vector<32x1xf32>
    %196 = math.rsqrt %195 : vector<32x1xf32>
    %197 = vector.broadcast %196 : vector<32x1xf32> to vector<32x7xf32>
    %198 = arith.mulf %186, %197 : vector<32x7xf32>
    %c0_208 = arith.constant 0 : index
    %c0_209 = arith.constant 0 : index
    %199 = vector.load %arg13[%c0_208, %c0_209] : memref<32x1xf32, #tpu.memory_space<vmem>>, vector<32x1xf32>
    %200 = vector.broadcast %199 : vector<32x1xf32> to vector<32x7xf32>
    %201 = arith.mulf %198, %200 : vector<32x7xf32>
    %c0_210 = arith.constant 0 : index
    %c0_211 = arith.constant 0 : index
    %202 = vector.load %arg14[%c0_210, %c0_211] : memref<32x1xf32, #tpu.memory_space<vmem>>, vector<32x1xf32>
    %203 = vector.broadcast %202 : vector<32x1xf32> to vector<32x7xf32>
    %204 = arith.addf %201, %203 : vector<32x7xf32>
    %cst_212 = arith.constant 0.000000e+00 : f32
    %205 = vector.broadcast %cst_212 : f32 to vector<32x7xf32>
    %206 = arith.cmpf oge, %204, %205 : vector<32x7xf32>
    %cst_213 = arith.constant 2.000000e-01 : f32
    %207 = vector.broadcast %cst_213 : f32 to vector<32x7xf32>
    %208 = arith.mulf %207, %204 : vector<32x7xf32>
    %209 = arith.select %206, %204, %208 : vector<32x7xi1>, vector<32x7xf32>
    %210 = arith.truncf %209 : vector<32x7xf32> to vector<32x7xbf16>
    %c0_214 = arith.constant 0 : index
    %c0_215 = arith.constant 0 : index
    %211 = vector.load %arg16[%c0_214, %c0_215] : memref<7x4xbf16, #tpu.memory_space<vmem>>, vector<7x4xbf16>
    %cst_216 = arith.constant dense<0.000000e+00> : vector<32x4xf32>
    %212 = tpu.matmul %210, %211, %cst_216 {dimension_numbers = #tpu.dot_dimension_numbers<[1], [0], [0], [1], [0, 0, 1, 1], [], []>} : vector<32x7xbf16>, vector<7x4xbf16>, vector<32x4xf32> -> vector<32x4xf32>
    %c0_217 = arith.constant 0 : index
    %c0_218 = arith.constant 0 : index
    %213 = vector.load %arg17[%c0_217, %c0_218] : memref<32x1xf32, #tpu.memory_space<vmem>>, vector<32x1xf32>
    %214 = vector.broadcast %213 : vector<32x1xf32> to vector<32x4xf32>
    %215 = arith.mulf %212, %214 : vector<32x4xf32>
    %cst_219 = arith.constant dense<0.000000e+00> : vector<4xf32>
    %216 = vector.multi_reduction <add>, %215, %cst_219 [0] : vector<32x4xf32> to vector<4xf32>
    %217 = vector.shape_cast %216 : vector<4xf32> to vector<1x4xf32>
    %c0_220 = arith.constant 0 : index
    %c0_221 = arith.constant 0 : index
    %218 = vector.load %arg18[%c0_220, %c0_221] : memref<1x1xf32, #tpu.memory_space<vmem>>, vector<1x1xf32>
    %219 = vector.broadcast %218 : vector<1x1xf32> to vector<1x4xf32>
    %220 = arith.addf %217, %219 : vector<1x4xf32>
    %c0_222 = arith.constant 0 : index
    %c0_223 = arith.constant 0 : index
    %c0_224 = arith.constant 0 : index
    %221 = vector.load %arg19[%c0_222, %c0_223, %c0_224] : memref<1x1x4xf32, #tpu.memory_space<vmem>>, vector<1x1x4xf32>
    %222 = vector.shape_cast %221 : vector<1x1x4xf32> to vector<1x4xf32>
    %223 = vector.shape_cast %220 : vector<1x4xf32> to vector<1x1x4xf32>
    tpu.vector_store %arg19[%c0_222, %c0_223, %c0_224], %223 {strides = array<i32>} : memref<1x1x4xf32, #tpu.memory_space<vmem>>, vector<1x1x4xf32>,
    return
  }
  func.func @transform_0(%arg0: i32) -> (i32, i32, i32) {
    %c0_i32 = arith.constant 0 : i32
    %c0_i32_0 = arith.constant 0 : i32
    %c0_i32_1 = arith.constant 0 : i32
    return %arg0, %c0_i32, %c0_i32_0 : i32, i32, i32
  }
  func.func @transform_1(%arg0: i32) -> (i32, i32) {
    %c0_i32 = arith.constant 0 : i32
    %c0_i32_0 = arith.constant 0 : i32
    %c0_i32_1 = arith.constant 0 : i32
    return %c0_i32, %c0_i32_0 : i32, i32
  }
  func.func @transform_2(%arg0: i32) -> (i32, i32) {
    %c0_i32 = arith.constant 0 : i32
    %c0_i32_0 = arith.constant 0 : i32
    %c0_i32_1 = arith.constant 0 : i32
    return %c0_i32, %c0_i32_0 : i32, i32
  }
  func.func @transform_3(%arg0: i32) -> (i32, i32) {
    %c0_i32 = arith.constant 0 : i32
    %c0_i32_0 = arith.constant 0 : i32
    %c0_i32_1 = arith.constant 0 : i32
    return %c0_i32, %c0_i32_0 : i32, i32
  }
  func.func @transform_4(%arg0: i32) -> (i32, i32) {
    %c0_i32 = arith.constant 0 : i32
    %c0_i32_0 = arith.constant 0 : i32
    %c0_i32_1 = arith.constant 0 : i32
    return %c0_i32, %c0_i32_0 : i32, i32
  }
  func.func @transform_5(%arg0: i32) -> (i32, i32) {
    %c0_i32 = arith.constant 0 : i32
    %c0_i32_0 = arith.constant 0 : i32
    %c0_i32_1 = arith.constant 0 : i32
    return %c0_i32, %c0_i32_0 : i32, i32
  }
  func.func @transform_6(%arg0: i32) -> (i32, i32) {
    %c0_i32 = arith.constant 0 : i32
    %c0_i32_0 = arith.constant 0 : i32
    %c0_i32_1 = arith.constant 0 : i32
    return %c0_i32, %c0_i32_0 : i32, i32
  }
  func.func @transform_7(%arg0: i32) -> (i32, i32) {
    %c0_i32 = arith.constant 0 : i32
    %c0_i32_0 = arith.constant 0 : i32
    %c0_i32_1 = arith.constant 0 : i32
    return %c0_i32, %c0_i32_0 : i32, i32
  }
  func.func @transform_8(%arg0: i32) -> (i32, i32) {
    %c0_i32 = arith.constant 0 : i32
    %c0_i32_0 = arith.constant 0 : i32
    %c0_i32_1 = arith.constant 0 : i32
    return %c0_i32, %c0_i32_0 : i32, i32
  }
  func.func @transform_9(%arg0: i32) -> (i32, i32) {
    %c0_i32 = arith.constant 0 : i32
    %c0_i32_0 = arith.constant 0 : i32
    %c0_i32_1 = arith.constant 0 : i32
    return %c0_i32, %c0_i32_0 : i32, i32
  }
  func.func @transform_10(%arg0: i32) -> (i32, i32) {
    %c0_i32 = arith.constant 0 : i32
    %c0_i32_0 = arith.constant 0 : i32
    %c0_i32_1 = arith.constant 0 : i32
    return %c0_i32, %c0_i32_0 : i32, i32
  }
  func.func @transform_11(%arg0: i32) -> (i32, i32) {
    %c0_i32 = arith.constant 0 : i32
    %c0_i32_0 = arith.constant 0 : i32
    %c0_i32_1 = arith.constant 0 : i32
    return %c0_i32, %c0_i32_0 : i32, i32
  }
  func.func @transform_12(%arg0: i32) -> (i32, i32) {
    %c0_i32 = arith.constant 0 : i32
    %c0_i32_0 = arith.constant 0 : i32
    %c0_i32_1 = arith.constant 0 : i32
    return %c0_i32, %c0_i32_0 : i32, i32
  }
  func.func @transform_13(%arg0: i32) -> (i32, i32) {
    %c0_i32 = arith.constant 0 : i32
    %c0_i32_0 = arith.constant 0 : i32
    %c0_i32_1 = arith.constant 0 : i32
    return %c0_i32, %c0_i32_0 : i32, i32
  }
  func.func @transform_14(%arg0: i32) -> (i32, i32) {
    %c0_i32 = arith.constant 0 : i32
    %c0_i32_0 = arith.constant 0 : i32
    %c0_i32_1 = arith.constant 0 : i32
    return %c0_i32, %c0_i32_0 : i32, i32
  }
  func.func @transform_15(%arg0: i32) -> (i32, i32) {
    %c0_i32 = arith.constant 0 : i32
    %c0_i32_0 = arith.constant 0 : i32
    %c0_i32_1 = arith.constant 0 : i32
    return %c0_i32, %c0_i32_0 : i32, i32
  }
  func.func @transform_16(%arg0: i32) -> (i32, i32) {
    %c0_i32 = arith.constant 0 : i32
    %c0_i32_0 = arith.constant 0 : i32
    %c0_i32_1 = arith.constant 0 : i32
    return %c0_i32, %c0_i32_0 : i32, i32
  }
  func.func @transform_17(%arg0: i32) -> (i32, i32) {
    %c0_i32 = arith.constant 0 : i32
    %c0_i32_0 = arith.constant 0 : i32
    %c0_i32_1 = arith.constant 0 : i32
    return %c0_i32, %c0_i32_0 : i32, i32
  }
  func.func @transform_18(%arg0: i32) -> (i32, i32, i32) {
    %c0_i32 = arith.constant 0 : i32
    %c0_i32_0 = arith.constant 0 : i32
    %c0_i32_1 = arith.constant 0 : i32
    return %arg0, %c0_i32, %c0_i32_0 : i32, i32, i32
  }
}

</mosaic_0001>

<llo_original>
// kernel: tpu_custom_call.1
$region0: #{tpu_custom_call.1}
  #allocation0 [shape = 'u32[]', space=smem, size = 0x4, offset = 0x4, fixed_abs, tag = 'smem constant byte address 0x4 - core index']
  #allocation1 [shape = 'u32[72,128]{1,0:T(1,128)}', space=vmem, size = 0x9000, scoped, tag = 'internal scratch']
  #allocation2 [shape = 'f32[128,267]{1,0:T(8,128)}', space=vmem, size = 0x30000, scoped, tag = 'scratch operand']
  #allocation3 [shape = 'f32[128,51]{1,0:T(8,128)}', space=vmem, size = 0x10000, scoped, tag = 'scratch operand']
  #allocation4 [shape = 'f32[256,7]{1,0:T(8,128)}', space=vmem, size = 0x20000, scoped, tag = 'scratch operand']
  #allocation5 [shape = 'f32[8,81]{1,0:T(8,128)}', space=vmem, size = 0x1000, scoped, tag = 'scratch operand']
  #allocation6 [shape = 'f32[16,25]{1,0:T(8,128)}', space=vmem, size = 0x2000, scoped, tag = 'scratch operand']
  #allocation7 [shape = 'f32[1,1]{1,0:T(1,128)S(1)}', space=vmem, size = 0x200, scoped, tag = 'scoped memory for tpu_custom_call.1']
  %s0 = inlined_call_operand.vmem [shape: f32[2,8,324], index: 0, kind: input, shape index: {}]
  %s1 = inlined_call_operand.vmem [shape: bf16[8,128], index: 1, kind: input, shape index: {}]
  %s2 = inlined_call_operand.vmem [shape: f32[8,1], index: 2, kind: input, shape index: {}]
  %s3 = inlined_call_operand.vmem [shape: bf16[267,81], index: 3, kind: input, shape index: {}]
  %s4 = inlined_call_operand.vmem [shape: bf16[16,128], index: 4, kind: input, shape index: {}]
  %s5 = inlined_call_operand.vmem [shape: f32[16,1], index: 5, kind: input, shape index: {}]
  %s6 = inlined_call_operand.vmem [shape: f32[16,1], index: 6, kind: input, shape index: {}]
  %s7 = inlined_call_operand.vmem [shape: f32[16,1], index: 7, kind: input, shape index: {}]
  %s8 = inlined_call_operand.vmem [shape: f32[1,51], index: 8, kind: input, shape index: {}]
  %s9 = inlined_call_operand.vmem [shape: bf16[51,25], index: 9, kind: input, shape index: {}]
  %s10 = inlined_call_operand.vmem [shape: bf16[32,256], index: 10, kind: input, shape index: {}]
  %s11 = inlined_call_operand.vmem [shape: f32[32,1], index: 11, kind: input, shape index: {}]
  %s12 = inlined_call_operand.vmem [shape: f32[32,1], index: 12, kind: input, shape index: {}]
  %s13 = inlined_call_operand.vmem [shape: f32[32,1], index: 13, kind: input, shape index: {}]
  %s14 = inlined_call_operand.vmem [shape: f32[1,7], index: 14, kind: input, shape index: {}]
  %s15 = inlined_call_operand.vmem [shape: bf16[7,4], index: 15, kind: input, shape index: {}]
  %s16 = inlined_call_operand.vmem [shape: f32[32,1], index: 16, kind: input, shape index: {}]
  %s17 = inlined_call_operand.<no memory space> [shape: f32[1,1], index: 17, kind: input, shape index: {}]
  %s18 = inlined_call_operand.hbm [shape: f32[2,1,4], index: 18, kind: output, shape index: {}]
  %s19 = sld [smem:[#allocation0]]
  $region105: #{tpu_custom_call.1} parent=0
    _
  %s21 = ssub.s32 1, %s19
  %s22 = scalar_select 0, %s21, %s19
  %v23 = vstv %s17
  %24 = vst [vmem:[#allocation7] sm:$0x1] %v23
  $region1: #{tpu_custom_call.1} parent=0
    #allocation8 [shape = 'u8[1024]{0}', space=vmem, size = 0x400, scoped, tag = 'output window, operand 0']
    #allocation9 [shape = 's32[2]{0}', space=sflag, size = 0x8, scoped, tag = 'scoped memory for tpu_custom_call.1']
    %25 = vsyncpa [#allocation9], 0
    %s26 = scalar_lea.sflag [#allocation9], 1
    %27 = vsyncpa %s26, 0
    loop: start=0, step=1, limit=4
    $region2: #{tpu_custom_call.1} parent=1 // loop_pre_header
      _
    $region3: #{tpu_custom_call.1} parent=1 // loop_header
      %s29 = sphi 0, %s33
      %p30 = scmp.ge.s32.totalorder %s29, 4
      %s39 = sphi 0, %s41
      %s42 = sphi 0, %s39
      %s43 = sphi 0, %s42
      %s59 = sphi 0, %s43
      %s63 = sphi 0, %s63
      %s65 = sphi 0, %s63
      %s66 = sphi 0, %s65
      %s80 = sphi 0, %s66
      %s84 = sphi 0, %s84
      %s86 = sphi 0, %s84
      %s87 = sphi 0, %s86
      %s101 = sphi 0, %s87
      %s105 = sphi 0, %s105
      %s107 = sphi 0, %s105
      %s108 = sphi 0, %s107
      %s122 = sphi 0, %s108
      %s126 = sphi 0, %s126
      %s128 = sphi 0, %s126
      %s129 = sphi 0, %s128
      %s143 = sphi 0, %s129
      %s147 = sphi 0, %s147
      %s149 = sphi 0, %s147
      %s150 = sphi 0, %s149
      %s164 = sphi 0, %s150
      %s168 = sphi 0, %s168
      %s170 = sphi 0, %s168
      %s171 = sphi 0, %s170
      %s185 = sphi 0, %s171
      %s189 = sphi 0, %s189
      %s191 = sphi 0, %s189
      %s192 = sphi 0, %s191
      %s206 = sphi 0, %s192
      %s210 = sphi 0, %s210
      %s212 = sphi 0, %s210
      %s213 = sphi 0, %s212
      %s227 = sphi 0, %s213
      %s231 = sphi 0, %s231
      %s233 = sphi 0, %s231
      %s234 = sphi 0, %s233
      %s248 = sphi 0, %s234
      %s252 = sphi 0, %s252
      %s254 = sphi 0, %s252
      %s255 = sphi 0, %s254
      %s269 = sphi 0, %s255
      %s273 = sphi 0, %s273
      %s275 = sphi 0, %s273
      %s276 = sphi 0, %s275
      %s290 = sphi 0, %s276
      %s294 = sphi 0, %s294
      %s296 = sphi 0, %s294
      %s297 = sphi 0, %s296
      %s311 = sphi 0, %s297
      %s315 = sphi 0, %s315
      %s317 = sphi 0, %s315
      %s318 = sphi 0, %s317
      %s332 = sphi 0, %s318
      %s336 = sphi 0, %s336
      %s338 = sphi 0, %s336
      %s339 = sphi 0, %s338
      %s353 = sphi 0, %s339
      %s357 = sphi 0, %s357
      %s359 = sphi 0, %s357
      %s360 = sphi 0, %s359
      %s374 = sphi 0, %s360
      %s378 = sphi 0, %s378
      %s380 = sphi 0, %s378
      %s381 = sphi 0, %s380
      %s395 = sphi 0, %s381
      %s399 = sphi 0, %s399
      %s401 = sphi 0, %s399
      %s402 = sphi 0, %s401
      %s416 = sphi 0, %s402
      %s422 = sphi 0, %s424
      %s425 = sphi 0, %s422
      %s426 = sphi 0, %s425
      %s442 = sphi 0, %s426
    $region4: #{tpu_custom_call.1} parent=1 // loop_header_branch
      %32 = sbr.rel (%p30) target = $region8
    $region5: #{tpu_custom_call.1} parent=1 // loop_body
      %s34 = ssub.s32 %s29, 1
      %s35 = ssub.s32 %s29, 2
      %s36 = sadd.s32 %s29, 1
      %s37 = ssub.s32 %s29, %s36
      %p38 = scmp.eq.s32.totalorder %s37, 0
      %s40 = sadd.s32 %s39, 1
      %s41 = scalar_select %p38, %s39, %s40
      %p44 = pneg %p38
      %p45 = scmp.eq.s32.totalorder %s29, 1
      %p46 = por %p44, %p45
      %p47 = scmp.ne.s32.totalorder %s39, %s42
      %p48 = scmp.eq.s32.totalorder %s29, 0
      %p49 = por %p47, %p48
      %p50 = scmp.ne.s32.totalorder %s39, %s42
      %p51 = scmp.eq.s32.totalorder %s34, 1
      %p52 = por %p50, %p51
      %p53 = scmp.ne.s32.totalorder %s42, %s43
      %p54 = scmp.eq.s32.totalorder %s34, 0
      %p55 = por %p53, %p54
      %p56 = scmp.ne.s32.totalorder %s42, %s43
      %p57 = scmp.eq.s32.totalorder %s35, 1
      %p58 = por %p56, %p57
      %p60 = scmp.ne.s32.totalorder %s43, %s59
      %p61 = scmp.eq.s32.totalorder %s35, 0
      %p62 = por %p60, %p61
      %s64 = sadd.s32 %s63, 1
      %p67 = scmp.eq.s32.totalorder %s29, 1
      %p68 = scmp.ne.s32.totalorder %s63, %s65
      %p69 = scmp.eq.s32.totalorder %s29, 0
      %p70 = por %p68, %p69
      %p71 = scmp.ne.s32.totalorder %s63, %s65
      %p72 = scmp.eq.s32.totalorder %s34, 1
      %p73 = por %p71, %p72
      %p74 = scmp.ne.s32.totalorder %s65, %s66
      %p75 = scmp.eq.s32.totalorder %s34, 0
      %p76 = por %p74, %p75
      %p77 = scmp.ne.s32.totalorder %s65, %s66
      %p78 = scmp.eq.s32.totalorder %s35, 1
      %p79 = por %p77, %p78
      %p81 = scmp.ne.s32.totalorder %s66, %s80
      %p82 = scmp.eq.s32.totalorder %s35, 0
      %p83 = por %p81, %p82
      %s85 = sadd.s32 %s84, 1
      %p88 = scmp.eq.s32.totalorder %s29, 1
      %p89 = scmp.ne.s32.totalorder %s84, %s86
      %p90 = scmp.eq.s32.totalorder %s29, 0
      %p91 = por %p89, %p90
      %p92 = scmp.ne.s32.totalorder %s84, %s86
      %p93 = scmp.eq.s32.totalorder %s34, 1
      %p94 = por %p92, %p93
      %p95 = scmp.ne.s32.totalorder %s86, %s87
      %p96 = scmp.eq.s32.totalorder %s34, 0
      %p97 = por %p95, %p96
      %p98 = scmp.ne.s32.totalorder %s86, %s87
      %p99 = scmp.eq.s32.totalorder %s35, 1
      %p100 = por %p98, %p99
      %p102 = scmp.ne.s32.totalorder %s87, %s101
      %p103 = scmp.eq.s32.totalorder %s35, 0
      %p104 = por %p102, %p103
      %s106 = sadd.s32 %s105, 1
      %p109 = scmp.eq.s32.totalorder %s29, 1
      %p110 = scmp.ne.s32.totalorder %s105, %s107
      %p111 = scmp.eq.s32.totalorder %s29, 0
      %p112 = por %p110, %p111
      %p113 = scmp.ne.s32.totalorder %s105, %s107
      %p114 = scmp.eq.s32.totalorder %s34, 1
      %p115 = por %p113, %p114
      %p116 = scmp.ne.s32.totalorder %s107, %s108
      %p117 = scmp.eq.s32.totalorder %s34, 0
      %p118 = por %p116, %p117
      %p119 = scmp.ne.s32.totalorder %s107, %s108
      %p120 = scmp.eq.s32.totalorder %s35, 1
      %p121 = por %p119, %p120
      %p123 = scmp.ne.s32.totalorder %s108, %s122
      %p124 = scmp.eq.s32.totalorder %s35, 0
      %p125 = por %p123, %p124
      %s127 = sadd.s32 %s126, 1
      %p130 = scmp.eq.s32.totalorder %s29, 1
      %p131 = scmp.ne.s32.totalorder %s126, %s128
      %p132 = scmp.eq.s32.totalorder %s29, 0
      %p133 = por %p131, %p132
      %p134 = scmp.ne.s32.totalorder %s126, %s128
      %p135 = scmp.eq.s32.totalorder %s34, 1
      %p136 = por %p134, %p135
      %p137 = scmp.ne.s32.totalorder %s128, %s129
      %p138 = scmp.eq.s32.totalorder %s34, 0
      %p139 = por %p137, %p138
      %p140 = scmp.ne.s32.totalorder %s128, %s129
      %p141 = scmp.eq.s32.totalorder %s35, 1
      %p142 = por %p140, %p141
      %p144 = scmp.ne.s32.totalorder %s129, %s143
      %p145 = scmp.eq.s32.totalorder %s35, 0
      %p146 = por %p144, %p145
      %s148 = sadd.s32 %s147, 1
      %p151 = scmp.eq.s32.totalorder %s29, 1
      %p152 = scmp.ne.s32.totalorder %s147, %s149
      %p153 = scmp.eq.s32.totalorder %s29, 0
      %p154 = por %p152, %p153
      %p155 = scmp.ne.s32.totalorder %s147, %s149
      %p156 = scmp.eq.s32.totalorder %s34, 1
      %p157 = por %p155, %p156
      %p158 = scmp.ne.s32.totalorder %s149, %s150
      %p159 = scmp.eq.s32.totalorder %s34, 0
      %p160 = por %p158, %p159
      %p161 = scmp.ne.s32.totalorder %s149, %s150
      %p162 = scmp.eq.s32.totalorder %s35, 1
      %p163 = por %p161, %p162
      %p165 = scmp.ne.s32.totalorder %s150, %s164
      %p166 = scmp.eq.s32.totalorder %s35, 0
      %p167 = por %p165, %p166
      %s169 = sadd.s32 %s168, 1
      %p172 = scmp.eq.s32.totalorder %s29, 1
      %p173 = scmp.ne.s32.totalorder %s168, %s170
      %p174 = scmp.eq.s32.totalorder %s29, 0
      %p175 = por %p173, %p174
      %p176 = scmp.ne.s32.totalorder %s168, %s170
      %p177 = scmp.eq.s32.totalorder %s34, 1
      %p178 = por %p176, %p177
      %p179 = scmp.ne.s32.totalorder %s170, %s171
      %p180 = scmp.eq.s32.totalorder %s34, 0
      %p181 = por %p179, %p180
      %p182 = scmp.ne.s32.totalorder %s170, %s171
      %p183 = scmp.eq.s32.totalorder %s35, 1
      %p184 = por %p182, %p183
      %p186 = scmp.ne.s32.totalorder %s171, %s185
      %p187 = scmp.eq.s32.totalorder %s35, 0
      %p188 = por %p186, %p187
      %s190 = sadd.s32 %s189, 1
      %p193 = scmp.eq.s32.totalorder %s29, 1
      %p194 = scmp.ne.s32.totalorder %s189, %s191
      %p195 = scmp.eq.s32.totalorder %s29, 0
      %p196 = por %p194, %p195
      %p197 = scmp.ne.s32.totalorder %s189, %s191
      %p198 = scmp.eq.s32.totalorder %s34, 1
      %p199 = por %p197, %p198
      %p200 = scmp.ne.s32.totalorder %s191, %s192
      %p201 = scmp.eq.s32.totalorder %s34, 0
      %p202 = por %p200, %p201
      %p203 = scmp.ne.s32.totalorder %s191, %s192
      %p204 = scmp.eq.s32.totalorder %s35, 1
      %p205 = por %p203, %p204
      %p207 = scmp.ne.s32.totalorder %s192, %s206
      %p208 = scmp.eq.s32.totalorder %s35, 0
      %p209 = por %p207, %p208
      %s211 = sadd.s32 %s210, 1
      %p214 = scmp.eq.s32.totalorder %s29, 1
      %p215 = scmp.ne.s32.totalorder %s210, %s212
      %p216 = scmp.eq.s32.totalorder %s29, 0
      %p217 = por %p215, %p216
      %p218 = scmp.ne.s32.totalorder %s210, %s212
      %p219 = scmp.eq.s32.totalorder %s34, 1
      %p220 = por %p218, %p219
      %p221 = scmp.ne.s32.totalorder %s212, %s213
      %p222 = scmp.eq.s32.totalorder %s34, 0
      %p223 = por %p221, %p222
      %p224 = scmp.ne.s32.totalorder %s212, %s213
      %p225 = scmp.eq.s32.totalorder %s35, 1
      %p226 = por %p224, %p225
      %p228 = scmp.ne.s32.totalorder %s213, %s227
      %p229 = scmp.eq.s32.totalorder %s35, 0
      %p230 = por %p228, %p229
      %s232 = sadd.s32 %s231, 1
      %p235 = scmp.eq.s32.totalorder %s29, 1
      %p236 = scmp.ne.s32.totalorder %s231, %s233
      %p237 = scmp.eq.s32.totalorder %s29, 0
      %p238 = por %p236, %p237
      %p239 = scmp.ne.s32.totalorder %s231, %s233
      %p240 = scmp.eq.s32.totalorder %s34, 1
      %p241 = por %p239, %p240
      %p242 = scmp.ne.s32.totalorder %s233, %s234
      %p243 = scmp.eq.s32.totalorder %s34, 0
      %p244 = por %p242, %p243
      %p245 = scmp.ne.s32.totalorder %s233, %s234
      %p246 = scmp.eq.s32.totalorder %s35, 1
      %p247 = por %p245, %p246
      %p249 = scmp.ne.s32.totalorder %s234, %s248
      %p250 = scmp.eq.s32.totalorder %s35, 0
      %p251 = por %p249, %p250
      %s253 = sadd.s32 %s252, 1
      %p256 = scmp.eq.s32.totalorder %s29, 1
      %p257 = scmp.ne.s32.totalorder %s252, %s254
      %p258 = scmp.eq.s32.totalorder %s29, 0
      %p259 = por %p257, %p258
      %p260 = scmp.ne.s32.totalorder %s252, %s254
      %p261 = scmp.eq.s32.totalorder %s34, 1
      %p262 = por %p260, %p261
      %p263 = scmp.ne.s32.totalorder %s254, %s255
      %p264 = scmp.eq.s32.totalorder %s34, 0
      %p265 = por %p263, %p264
      %p266 = scmp.ne.s32.totalorder %s254, %s255
      %p267 = scmp.eq.s32.totalorder %s35, 1
      %p268 = por %p266, %p267
      %p270 = scmp.ne.s32.totalorder %s255, %s269
      %p271 = scmp.eq.s32.totalorder %s35, 0
      %p272 = por %p270, %p271
      %s274 = sadd.s32 %s273, 1
      %p277 = scmp.eq.s32.totalorder %s29, 1
      %p278 = scmp.ne.s32.totalorder %s273, %s275
      %p279 = scmp.eq.s32.totalorder %s29, 0
      %p280 = por %p278, %p279
      %p281 = scmp.ne.s32.totalorder %s273, %s275
      %p282 = scmp.eq.s32.totalorder %s34, 1
      %p283 = por %p281, %p282
      %p284 = scmp.ne.s32.totalorder %s275, %s276
      %p285 = scmp.eq.s32.totalorder %s34, 0
      %p286 = por %p284, %p285
      %p287 = scmp.ne.s32.totalorder %s275, %s276
      %p288 = scmp.eq.s32.totalorder %s35, 1
      %p289 = por %p287, %p288
      %p291 = scmp.ne.s32.totalorder %s276, %s290
      %p292 = scmp.eq.s32.totalorder %s35, 0
      %p293 = por %p291, %p292
      %s295 = sadd.s32 %s294, 1
      %p298 = scmp.eq.s32.totalorder %s29, 1
      %p299 = scmp.ne.s32.totalorder %s294, %s296
      %p300 = scmp.eq.s32.totalorder %s29, 0
      %p301 = por %p299, %p300
      %p302 = scmp.ne.s32.totalorder %s294, %s296
      %p303 = scmp.eq.s32.totalorder %s34, 1
      %p304 = por %p302, %p303
      %p305 = scmp.ne.s32.totalorder %s296, %s297
      %p306 = scmp.eq.s32.totalorder %s34, 0
      %p307 = por %p305, %p306
      %p308 = scmp.ne.s32.totalorder %s296, %s297
      %p309 = scmp.eq.s32.totalorder %s35, 1
      %p310 = por %p308, %p309
      %p312 = scmp.ne.s32.totalorder %s297, %s311
      %p313 = scmp.eq.s32.totalorder %s35, 0
      %p314 = por %p312, %p313
      %s316 = sadd.s32 %s315, 1
      %p319 = scmp.eq.s32.totalorder %s29, 1
      %p320 = scmp.ne.s32.totalorder %s315, %s317
      %p321 = scmp.eq.s32.totalorder %s29, 0
      %p322 = por %p320, %p321
      %p323 = scmp.ne.s32.totalorder %s315, %s317
      %p324 = scmp.eq.s32.totalorder %s34, 1
      %p325 = por %p323, %p324
      %p326 = scmp.ne.s32.totalorder %s317, %s318
      %p327 = scmp.eq.s32.totalorder %s34, 0
      %p328 = por %p326, %p327
      %p329 = scmp.ne.s32.totalorder %s317, %s318
      %p330 = scmp.eq.s32.totalorder %s35, 1
      %p331 = por %p329, %p330
      %p333 = scmp.ne.s32.totalorder %s318, %s332
      %p334 = scmp.eq.s32.totalorder %s35, 0
      %p335 = por %p333, %p334
      %s337 = sadd.s32 %s336, 1
      %p340 = scmp.eq.s32.totalorder %s29, 1
      %p341 = scmp.ne.s32.totalorder %s336, %s338
      %p342 = scmp.eq.s32.totalorder %s29, 0
      %p343 = por %p341, %p342
      %p344 = scmp.ne.s32.totalorder %s336, %s338
      %p345 = scmp.eq.s32.totalorder %s34, 1
      %p346 = por %p344, %p345
      %p347 = scmp.ne.s32.totalorder %s338, %s339
      %p348 = scmp.eq.s32.totalorder %s34, 0
      %p349 = por %p347, %p348
      %p350 = scmp.ne.s32.totalorder %s338, %s339
      %p351 = scmp.eq.s32.totalorder %s35, 1
      %p352 = por %p350, %p351
      %p354 = scmp.ne.s32.totalorder %s339, %s353
      %p355 = scmp.eq.s32.totalorder %s35, 0
      %p356 = por %p354, %p355
      %s358 = sadd.s32 %s357, 1
      %p361 = scmp.eq.s32.totalorder %s29, 1
      %p362 = scmp.ne.s32.totalorder %s357, %s359
      %p363 = scmp.eq.s32.totalorder %s29, 0
      %p364 = por %p362, %p363
      %p365 = scmp.ne.s32.totalorder %s357, %s359
      %p366 = scmp.eq.s32.totalorder %s34, 1
      %p367 = por %p365, %p366
      %p368 = scmp.ne.s32.totalorder %s359, %s360
      %p369 = scmp.eq.s32.totalorder %s34, 0
      %p370 = por %p368, %p369
      %p371 = scmp.ne.s32.totalorder %s359, %s360
      %p372 = scmp.eq.s32.totalorder %s35, 1
      %p373 = por %p371, %p372
      %p375 = scmp.ne.s32.totalorder %s360, %s374
      %p376 = scmp.eq.s32.totalorder %s35, 0
      %p377 = por %p375, %p376
      %s379 = sadd.s32 %s378, 1
      %p382 = scmp.eq.s32.totalorder %s29, 1
      %p383 = scmp.ne.s32.totalorder %s378, %s380
      %p384 = scmp.eq.s32.totalorder %s29, 0
      %p385 = por %p383, %p384
      %p386 = scmp.ne.s32.totalorder %s378, %s380
      %p387 = scmp.eq.s32.totalorder %s34, 1
      %p388 = por %p386, %p387
      %p389 = scmp.ne.s32.totalorder %s380, %s381
      %p390 = scmp.eq.s32.totalorder %s34, 0
      %p391 = por %p389, %p390
      %p392 = scmp.ne.s32.totalorder %s380, %s381
      %p393 = scmp.eq.s32.totalorder %s35, 1
      %p394 = por %p392, %p393
      %p396 = scmp.ne.s32.totalorder %s381, %s395
      %p397 = scmp.eq.s32.totalorder %s35, 0
      %p398 = por %p396, %p397
      %s400 = sadd.s32 %s399, 1
      %p403 = scmp.eq.s32.totalorder %s29, 1
      %p404 = scmp.ne.s32.totalorder %s399, %s401
      %p405 = scmp.eq.s32.totalorder %s29, 0
      %p406 = por %p404, %p405
      %p407 = scmp.ne.s32.totalorder %s399, %s401
      %p408 = scmp.eq.s32.totalorder %s34, 1
      %p409 = por %p407, %p408
      %p410 = scmp.ne.s32.totalorder %s401, %s402
      %p411 = scmp.eq.s32.totalorder %s34, 0
      %p412 = por %p410, %p411
      %p413 = scmp.ne.s32.totalorder %s401, %s402
      %p414 = scmp.eq.s32.totalorder %s35, 1
      %p415 = por %p413, %p414
      %p417 = scmp.ne.s32.totalorder %s402, %s416
      %p418 = scmp.eq.s32.totalorder %s35, 0
      %p419 = por %p417, %p418
      %s420 = ssub.s32 %s29, %s36
      %p421 = scmp.eq.s32.totalorder %s420, 0
      %s423 = sadd.s32 %s422, 1
      %s424 = scalar_select %p421, %s422, %s423
      %p427 = pneg %p421
      %p428 = scmp.eq.s32.totalorder %s29, 1
      %p429 = por %p427, %p428
      %p430 = scmp.ne.s32.totalorder %s422, %s425
      %p431 = scmp.eq.s32.totalorder %s29, 0
      %p432 = por %p430, %p431
      %p433 = scmp.ne.s32.totalorder %s422, %s425
      %p434 = scmp.eq.s32.totalorder %s34, 1
      %p435 = por %p433, %p434
      %p436 = scmp.ne.s32.totalorder %s425, %s426
      %p437 = scmp.eq.s32.totalorder %s34, 0
      %p438 = por %p436, %p437
      %p439 = scmp.ne.s32.totalorder %s425, %s426
      %p440 = scmp.eq.s32.totalorder %s35, 1
      %p441 = por %p439, %p440
      %p443 = scmp.ne.s32.totalorder %s426, %s442
      %p444 = scmp.eq.s32.totalorder %s35, 0
      %p445 = por %p443, %p444
      %p446 = scmp.le.s32.totalorder 1, %s29
      %p447 = scmp.lt.s32.totalorder %s29, 3
      %p448 = pnand %p446, %p447
      %p449 = pneg %p448
      // Predicated region
      $region9: #{tpu_custom_call.1} parent=5 // pred_check
        _
      $region10: #{tpu_custom_call.1} parent=5 // pred_check_branch
        %451 = sbr.rel (%p448) target = $region12
      $region11: #{tpu_custom_call.1} parent=5 // pred_region
        %s452 = ssub.s32 %s29, 1
        // Predicated region
        $region13: #{tpu_custom_call.1} parent=11 // pred_check
          %p453 = pneg %p76
        $region14: #{tpu_custom_call.1} parent=11 // pred_check_branch
          %455 = sbr.rel (%p453) target = $region16
        $region15: #{tpu_custom_call.1} parent=11 // pred_region
          _
        $region16: #{tpu_custom_call.1} parent=11 // pred_fallthru
          _
        // Predicated region
        $region17: #{tpu_custom_call.1} parent=11 // pred_check
          %p456 = pneg %p97
        $region18: #{tpu_custom_call.1} parent=11 // pred_check_branch
          %458 = sbr.rel (%p456) target = $region20
        $region19: #{tpu_custom_call.1} parent=11 // pred_region
          _
        $region20: #{tpu_custom_call.1} parent=11 // pred_fallthru
          _
        // Predicated region
        $region21: #{tpu_custom_call.1} parent=11 // pred_check
          %p459 = pneg %p118
        $region22: #{tpu_custom_call.1} parent=11 // pred_check_branch
          %461 = sbr.rel (%p459) target = $region24
        $region23: #{tpu_custom_call.1} parent=11 // pred_region
          _
        $region24: #{tpu_custom_call.1} parent=11 // pred_fallthru
          _
        // Predicated region
        $region25: #{tpu_custom_call.1} parent=11 // pred_check
          %p462 = pneg %p139
        $region26: #{tpu_custom_call.1} parent=11 // pred_check_branch
          %464 = sbr.rel (%p462) target = $region28
        $region27: #{tpu_custom_call.1} parent=11 // pred_region
          _
        $region28: #{tpu_custom_call.1} parent=11 // pred_fallthru
          _
        // Predicated region
        $region29: #{tpu_custom_call.1} parent=11 // pred_check
          %p465 = pneg %p160
        $region30: #{tpu_custom_call.1} parent=11 // pred_check_branch
          %467 = sbr.rel (%p465) target = $region32
        $region31: #{tpu_custom_call.1} parent=11 // pred_region
          _
        $region32: #{tpu_custom_call.1} parent=11 // pred_fallthru
          _
        // Predicated region
        $region33: #{tpu_custom_call.1} parent=11 // pred_check
          %p468 = pneg %p181
        $region34: #{tpu_custom_call.1} parent=11 // pred_check_branch
          %470 = sbr.rel (%p468) target = $region36
        $region35: #{tpu_custom_call.1} parent=11 // pred_region
          _
        $region36: #{tpu_custom_call.1} parent=11 // pred_fallthru
          _
        // Predicated region
        $region37: #{tpu_custom_call.1} parent=11 // pred_check
          %p471 = pneg %p202
        $region38: #{tpu_custom_call.1} parent=11 // pred_check_branch
          %473 = sbr.rel (%p471) target = $region40
        $region39: #{tpu_custom_call.1} parent=11 // pred_region
          _
        $region40: #{tpu_custom_call.1} parent=11 // pred_fallthru
          _
        // Predicated region
        $region41: #{tpu_custom_call.1} parent=11 // pred_check
          %p474 = pneg %p223
        $region42: #{tpu_custom_call.1} parent=11 // pred_check_branch
          %476 = sbr.rel (%p474) target = $region44
        $region43: #{tpu_custom_call.1} parent=11 // pred_region
          _
        $region44: #{tpu_custom_call.1} parent=11 // pred_fallthru
          _
        // Predicated region
        $region45: #{tpu_custom_call.1} parent=11 // pred_check
          %p477 = pneg %p244
        $region46: #{tpu_custom_call.1} parent=11 // pred_check_branch
          %479 = sbr.rel (%p477) target = $region48
        $region47: #{tpu_custom_call.1} parent=11 // pred_region
          _
        $region48: #{tpu_custom_call.1} parent=11 // pred_fallthru
          _
        // Predicated region
        $region49: #{tpu_custom_call.1} parent=11 // pred_check
          %p480 = pneg %p265
        $region50: #{tpu_custom_call.1} parent=11 // pred_check_branch
          %482 = sbr.rel (%p480) target = $region52
        $region51: #{tpu_custom_call.1} parent=11 // pred_region
          _
        $region52: #{tpu_custom_call.1} parent=11 // pred_fallthru
          _
        // Predicated region
        $region53: #{tpu_custom_call.1} parent=11 // pred_check
          %p483 = pneg %p286
        $region54: #{tpu_custom_call.1} parent=11 // pred_check_branch
          %485 = sbr.rel (%p483) target = $region56
        $region55: #{tpu_custom_call.1} parent=11 // pred_region
          _
        $region56: #{tpu_custom_call.1} parent=11 // pred_fallthru
          _
        // Predicated region
        $region57: #{tpu_custom_call.1} parent=11 // pred_check
          %p486 = pneg %p307
        $region58: #{tpu_custom_call.1} parent=11 // pred_check_branch
          %488 = sbr.rel (%p486) target = $region60
        $region59: #{tpu_custom_call.1} parent=11 // pred_region
          _
        $region60: #{tpu_custom_call.1} parent=11 // pred_fallthru
          _
        // Predicated region
        $region61: #{tpu_custom_call.1} parent=11 // pred_check
          %p489 = pneg %p328
        $region62: #{tpu_custom_call.1} parent=11 // pred_check_branch
          %491 = sbr.rel (%p489) target = $region64
        $region63: #{tpu_custom_call.1} parent=11 // pred_region
          _
        $region64: #{tpu_custom_call.1} parent=11 // pred_fallthru
          _
        // Predicated region
        $region65: #{tpu_custom_call.1} parent=11 // pred_check
          %p492 = pneg %p349
        $region66: #{tpu_custom_call.1} parent=11 // pred_check_branch
          %494 = sbr.rel (%p492) target = $region68
        $region67: #{tpu_custom_call.1} parent=11 // pred_region
          _
        $region68: #{tpu_custom_call.1} parent=11 // pred_fallthru
          _
        // Predicated region
        $region69: #{tpu_custom_call.1} parent=11 // pred_check
          %p495 = pneg %p370
        $region70: #{tpu_custom_call.1} parent=11 // pred_check_branch
          %497 = sbr.rel (%p495) target = $region72
        $region71: #{tpu_custom_call.1} parent=11 // pred_region
          _
        $region72: #{tpu_custom_call.1} parent=11 // pred_fallthru
          _
        // Predicated region
        $region73: #{tpu_custom_call.1} parent=11 // pred_check
          %p498 = pneg %p391
        $region74: #{tpu_custom_call.1} parent=11 // pred_check_branch
          %500 = sbr.rel (%p498) target = $region76
        $region75: #{tpu_custom_call.1} parent=11 // pred_region
          _
        $region76: #{tpu_custom_call.1} parent=11 // pred_fallthru
          _
        // Predicated region
        $region77: #{tpu_custom_call.1} parent=11 // pred_check
          %p501 = pneg %p412
        $region78: #{tpu_custom_call.1} parent=11 // pred_check_branch
          %503 = sbr.rel (%p501) target = $region80
        $region79: #{tpu_custom_call.1} parent=11 // pred_region
          _
        $region80: #{tpu_custom_call.1} parent=11 // pred_fallthru
          _
      $region12: #{tpu_custom_call.1} parent=5 // pred_fallthru
        _
      %p504 = scmp.lt.s32.totalorder %s29, 2
      // Predicated region
      $region81: #{tpu_custom_call.1} parent=5 // pred_check
        %p505 = pneg %p504
      $region82: #{tpu_custom_call.1} parent=5 // pred_check_branch
        %507 = sbr.rel (%p505) target = $region84
      $region83: #{tpu_custom_call.1} parent=5 // pred_region
        // Predicated region
        $region85: #{tpu_custom_call.1} parent=83 // pred_check
          %p508 = pneg %p49
        $region86: #{tpu_custom_call.1} parent=83 // pred_check_branch
          %510 = sbr.rel (%p508) target = $region88
        $region87: #{tpu_custom_call.1} parent=83 // pred_region
          %p511 = scmp.lt.s32.totalorder %s29, 1
          %s512 = scalar_select %p511, %s29, 1
          %s513 = smul.addr %s512, 3
          %s514 = smul.addr %s513, 8
          %s515 = scalar_lea.vmem %s0, %s514
        $region88: #{tpu_custom_call.1} parent=83 // pred_fallthru
          _
      $region84: #{tpu_custom_call.1} parent=5 // pred_fallthru
        _
      %p516 = scmp.le.s32.totalorder 1, %s29
      %p517 = scmp.lt.s32.totalorder %s29, 3
      %p518 = pnand %p516, %p517
      %p519 = pneg %p518
      // Predicated region
      $region89: #{tpu_custom_call.1} parent=5 // pred_check
        _
      $region90: #{tpu_custom_call.1} parent=5 // pred_check_branch
        %521 = sbr.rel (%p518) target = $region92
      $region91: #{tpu_custom_call.1} parent=5 // pred_region
        %s522 = ssub.s32 %s29, 1
        %p523 = scmp.lt.s32.totalorder %s34, 1
        %s524 = scalar_select %p523, %s34, 1
        %s525 = smul.addr %s524, 3
        %s526 = smul.addr %s525, 8
        %s527 = scalar_lea.vmem %s0, %s526
        %p528 = pneg %p55
        %p529 = pneg %p52
        %p530 = pneg %p76
        %p531 = pneg %p73
        %p532 = pneg %p97
        %p533 = pneg %p94
        %p534 = pneg %p118
        %p535 = pneg %p115
        %p536 = pneg %p139
        %p537 = pneg %p136
        %p538 = pneg %p160
        %p539 = pneg %p157
        %p540 = pneg %p181
        %p541 = pneg %p178
        %p542 = pneg %p202
        %p543 = pneg %p199
        %p544 = pneg %p223
        %p545 = pneg %p220
        %p546 = pneg %p244
        %p547 = pneg %p241
        %p548 = pneg %p265
        %p549 = pneg %p262
        %p550 = pneg %p286
        %p551 = pneg %p283
        %p552 = pneg %p307
        %p553 = pneg %p304
        %p554 = pneg %p328
        %p555 = pneg %p325
        %p556 = pneg %p349
        %p557 = pneg %p346
        %p558 = pneg %p370
        %p559 = pneg %p367
        %p560 = pneg %p391
        %p561 = pneg %p388
        %p562 = pneg %p412
        %p563 = pneg %p409
        %p564 = pneg %p438
        %p565 = pneg %p435
        %s566 = sand.u32 %s425, 1
        %s567 = scalar_lea.sflag [#allocation9], %s566
        %s568 = sand.u32 %s425, 1
        %s569 = scalar_lea.vmem [#allocation8], %s568
        %p570 = scmp.lt.s32.totalorder %s34, 1
        %s571 = scalar_select %p570, %s34, 1
        %s572 = smul.addr %s571, 3
        %s573 = smul.addr %s572, 8
        %s574 = scalar_lea.vmem %s0, %s573
        %v576 = vld [vmem:[%s574] sm:$0xff]
        %v577 = vld [vmem:[%s574 + $0x8] sm:$0xff]
        %v578 = vld [vmem:[%s574 + $0x10] sm:$0xff]
        %579 = vst [vmem:[#allocation2] sm:$0xff] %v576
        %580 = vst [vmem:[#allocation2 + $0x8] sm:$0xff] %v577
        %vm581 = vcmask 89088
        %582 = vst.msk [vmem:[#allocation2 + $0x10] sm:$0xff] %vm581, %v578
        %v583 = vld [vmem:[%s574] sm:$0xff]
        %v584 = vld [vmem:[%s574 + $0x8] sm:$0xff]
        %v585 = vld [vmem:[%s574 + $0x10] sm:$0xff]
        %589 = vrot.lane.b32.xlu0 %v583, 127
        %v590 = vpop.permute.xlu0 %589
        %591 = vrot.lane.b32.xlu0 %v584, 127
        %v592 = vpop.permute.xlu0 %591
        %593 = vrot.lane.b32.xlu0 %v585, 127
        %v594 = vpop.permute.xlu0 %593
        %vm595 = vcmask 1039360
        %v596 = vsel %vm595, %v590, %v592
        %v597 = vsel %vm595, %v592, %v594
        %601 = vst [vmem:[#allocation2 + $0x18] sm:$0xff] %v596
        %602 = vst [vmem:[#allocation2 + $0x20] sm:$0xff] %v597
        %603 = vst.msk [vmem:[#allocation2 + $0x28] sm:$0xff] %vm581, %v594
        %v604 = vld [vmem:[%s574] sm:$0xff]
        %v605 = vld [vmem:[%s574 + $0x8] sm:$0xff]
        %v606 = vld [vmem:[%s574 + $0x10] sm:$0xff]
        %610 = vrot.lane.b32.xlu0 %v604, 126
        %v611 = vpop.permute.xlu0 %610
        %612 = vrot.lane.b32.xlu0 %v605, 126
        %v613 = vpop.permute.xlu0 %612
        %614 = vrot.lane.b32.xlu0 %v606, 126
        %v615 = vpop.permute.xlu0 %614
        %vm616 = vcmask 1031168
        %v617 = vsel %vm616, %v611, %v613
        %v618 = vsel %vm616, %v613, %v615
        %622 = vst [vmem:[#allocation2 + $0x30] sm:$0xff] %v617
        %623 = vst [vmem:[#allocation2 + $0x38] sm:$0xff] %v618
        %624 = vst.msk [vmem:[#allocation2 + $0x40] sm:$0xff] %vm581, %v615
        %v625 = vld [vmem:[%s574] sm:$0xff]
        %v626 = vld [vmem:[%s574 + $0x8] sm:$0xff]
        %v627 = vld [vmem:[%s574 + $0x10] sm:$0xff]
        %631 = vrot.lane.b32.xlu0 %v625, 125
        %v632 = vpop.permute.xlu0 %631
        %633 = vrot.lane.b32.xlu0 %v626, 125
        %v634 = vpop.permute.xlu0 %633
        %635 = vrot.lane.b32.xlu0 %v627, 125
        %v636 = vpop.permute.xlu0 %635
        %vm637 = vcmask 1022976
        %v638 = vsel %vm637, %v632, %v634
        %v639 = vsel %vm637, %v634, %v636
        %643 = vst [vmem:[#allocation2 + $0x48] sm:$0xff] %v638
        %644 = vst [vmem:[#allocation2 + $0x50] sm:$0xff] %v639
        %645 = vst.msk [vmem:[#allocation2 + $0x58] sm:$0xff] %vm581, %v636
        %v646 = vld [vmem:[%s574] sm:$0xff]
        %v647 = vld [vmem:[%s574 + $0x8] sm:$0xff]
        %v648 = vld [vmem:[%s574 + $0x10] sm:$0xff]
        %652 = vrot.lane.b32.xlu0 %v646, 110
        %v653 = vpop.permute.xlu0 %652
        %654 = vrot.lane.b32.xlu0 %v647, 110
        %v655 = vpop.permute.xlu0 %654
        %656 = vrot.lane.b32.xlu0 %v648, 110
        %v657 = vpop.permute.xlu0 %656
        %vm658 = vcmask 900096
        %v659 = vsel %vm658, %v653, %v655
        %v660 = vsel %vm658, %v655, %v657
        %664 = vst [vmem:[#allocation2 + $0x60] sm:$0xff] %v659
        %665 = vst [vmem:[#allocation2 + $0x68] sm:$0xff] %v660
        %666 = vst.msk [vmem:[#allocation2 + $0x70] sm:$0xff] %vm581, %v657
        %v667 = vld [vmem:[%s574] sm:$0xff]
        %v668 = vld [vmem:[%s574 + $0x8] sm:$0xff]
        %v669 = vld [vmem:[%s574 + $0x10] sm:$0xff]
        %673 = vrot.lane.b32.xlu0 %v667, 109
        %v674 = vpop.permute.xlu0 %673
        %675 = vrot.lane.b32.xlu0 %v668, 109
        %v676 = vpop.permute.xlu0 %675
        %677 = vrot.lane.b32.xlu0 %v669, 109
        %v678 = vpop.permute.xlu0 %677
        %vm679 = vcmask 891904
        %v680 = vsel %vm679, %v674, %v676
        %v681 = vsel %vm679, %v676, %v678
        %685 = vst [vmem:[#allocation2 + $0x78] sm:$0xff] %v680
        %686 = vst [vmem:[#allocation2 + $0x80] sm:$0xff] %v681
        %687 = vst.msk [vmem:[#allocation2 + $0x88] sm:$0xff] %vm581, %v678
        %v688 = vld [vmem:[%s574] sm:$0xff]
        %v689 = vld [vmem:[%s574 + $0x8] sm:$0xff]
        %v690 = vld [vmem:[%s574 + $0x10] sm:$0xff]
        %694 = vrot.lane.b32.xlu0 %v688, 108
        %v695 = vpop.permute.xlu0 %694
        %696 = vrot.lane.b32.xlu0 %v689, 108
        %v697 = vpop.permute.xlu0 %696
        %698 = vrot.lane.b32.xlu0 %v690, 108
        %v699 = vpop.permute.xlu0 %698
        %vm700 = vcmask 883712
        %v701 = vsel %vm700, %v695, %v697
        %v702 = vsel %vm700, %v697, %v699
        %706 = vst [vmem:[#allocation2 + $0x90] sm:$0xff] %v701
        %707 = vst [vmem:[#allocation2 + $0x98] sm:$0xff] %v702
        %708 = vst.msk [vmem:[#allocation2 + $0xa0] sm:$0xff] %vm581, %v699
        %v709 = vld [vmem:[%s574] sm:$0xff]
        %v710 = vld [vmem:[%s574 + $0x8] sm:$0xff]
        %v711 = vld [vmem:[%s574 + $0x10] sm:$0xff]
        %715 = vrot.lane.b32.xlu0 %v709, 107
        %v716 = vpop.permute.xlu0 %715
        %717 = vrot.lane.b32.xlu0 %v710, 107
        %v718 = vpop.permute.xlu0 %717
        %719 = vrot.lane.b32.xlu0 %v711, 107
        %v720 = vpop.permute.xlu0 %719
        %vm721 = vcmask 875520
        %v722 = vsel %vm721, %v716, %v718
        %v723 = vsel %vm721, %v718, %v720
        %727 = vst [vmem:[#allocation2 + $0xa8] sm:$0xff] %v722
        %728 = vst [vmem:[#allocation2 + $0xb0] sm:$0xff] %v723
        %729 = vst.msk [vmem:[#allocation2 + $0xb8] sm:$0xff] %vm581, %v720
        %v730 = vld [vmem:[%s574] sm:$0xff]
        %v731 = vld [vmem:[%s574 + $0x8] sm:$0xff]
        %v732 = vld [vmem:[%s574 + $0x10] sm:$0xff]
        %736 = vrot.lane.b32.xlu0 %v730, 92
        %v737 = vpop.permute.xlu0 %736
        %738 = vrot.lane.b32.xlu0 %v731, 92
        %v739 = vpop.permute.xlu0 %738
        %740 = vrot.lane.b32.xlu0 %v732, 92
        %v741 = vpop.permute.xlu0 %740
        %vm742 = vcmask 752640
        %v743 = vsel %vm742, %v737, %v739
        %v744 = vsel %vm742, %v739, %v741
        %748 = vst [vmem:[#allocation2 + $0xc0] sm:$0xff] %v743
        %749 = vst [vmem:[#allocation2 + $0xc8] sm:$0xff] %v744
        %750 = vst.msk [vmem:[#allocation2 + $0xd0] sm:$0xff] %vm581, %v741
        %v751 = vld [vmem:[%s574] sm:$0xff]
        %v752 = vld [vmem:[%s574 + $0x8] sm:$0xff]
        %v753 = vld [vmem:[%s574 + $0x10] sm:$0xff]
        %757 = vrot.lane.b32.xlu0 %v751, 91
        %v758 = vpop.permute.xlu0 %757
        %759 = vrot.lane.b32.xlu0 %v752, 91
        %v760 = vpop.permute.xlu0 %759
        %761 = vrot.lane.b32.xlu0 %v753, 91
        %v762 = vpop.permute.xlu0 %761
        %vm763 = vcmask 744448
        %v764 = vsel %vm763, %v758, %v760
        %v765 = vsel %vm763, %v760, %v762
        %769 = vst [vmem:[#allocation2 + $0xd8] sm:$0xff] %v764
        %770 = vst [vmem:[#allocation2 + $0xe0] sm:$0xff] %v765
        %771 = vst.msk [vmem:[#allocation2 + $0xe8] sm:$0xff] %vm581, %v762
        %v772 = vld [vmem:[%s574] sm:$0xff]
        %v773 = vld [vmem:[%s574 + $0x8] sm:$0xff]
        %v774 = vld [vmem:[%s574 + $0x10] sm:$0xff]
        %778 = vrot.lane.b32.xlu0 %v772, 90
        %v779 = vpop.permute.xlu0 %778
        %780 = vrot.lane.b32.xlu0 %v773, 90
        %v781 = vpop.permute.xlu0 %780
        %782 = vrot.lane.b32.xlu0 %v774, 90
        %v783 = vpop.permute.xlu0 %782
        %vm784 = vcmask 736256
        %v785 = vsel %vm784, %v779, %v781
        %v786 = vsel %vm784, %v781, %v783
        %790 = vst [vmem:[#allocation2 + $0xf0] sm:$0xff] %v785
        %791 = vst [vmem:[#allocation2 + $0xf8] sm:$0xff] %v786
        %792 = vst.msk [vmem:[#allocation2 + $0x100] sm:$0xff] %vm581, %v783
        %v793 = vld [vmem:[%s574] sm:$0xff]
        %v794 = vld [vmem:[%s574 + $0x8] sm:$0xff]
        %v795 = vld [vmem:[%s574 + $0x10] sm:$0xff]
        %799 = vrot.lane.b32.xlu0 %v793, 89
        %v800 = vpop.permute.xlu0 %799
        %801 = vrot.lane.b32.xlu0 %v794, 89
        %v802 = vpop.permute.xlu0 %801
        %803 = vrot.lane.b32.xlu0 %v795, 89
        %v804 = vpop.permute.xlu0 %803
        %vm805 = vcmask 728064
        %v806 = vsel %vm805, %v800, %v802
        %v807 = vsel %vm805, %v802, %v804
        %811 = vst [vmem:[#allocation2 + $0x108] sm:$0xff] %v806
        %812 = vst [vmem:[#allocation2 + $0x110] sm:$0xff] %v807
        %813 = vst.msk [vmem:[#allocation2 + $0x118] sm:$0xff] %vm581, %v804
        %v814 = vld [vmem:[%s574] sm:$0xff]
        %v815 = vld [vmem:[%s574 + $0x8] sm:$0xff]
        %v816 = vld [vmem:[%s574 + $0x10] sm:$0xff]
        %820 = vrot.lane.b32.xlu0 %v814, 74
        %v821 = vpop.permute.xlu0 %820
        %822 = vrot.lane.b32.xlu0 %v815, 74
        %v823 = vpop.permute.xlu0 %822
        %824 = vrot.lane.b32.xlu0 %v816, 74
        %v825 = vpop.permute.xlu0 %824
        %vm826 = vcmask 605184
        %v827 = vsel %vm826, %v821, %v823
        %v828 = vsel %vm826, %v823, %v825
        %832 = vst [vmem:[#allocation2 + $0x120] sm:$0xff] %v827
        %833 = vst [vmem:[#allocation2 + $0x128] sm:$0xff] %v828
        %834 = vst.msk [vmem:[#allocation2 + $0x130] sm:$0xff] %vm581, %v825
        %v835 = vld [vmem:[%s574] sm:$0xff]
        %v836 = vld [vmem:[%s574 + $0x8] sm:$0xff]
        %v837 = vld [vmem:[%s574 + $0x10] sm:$0xff]
        %841 = vrot.lane.b32.xlu0 %v835, 73
        %v842 = vpop.permute.xlu0 %841
        %843 = vrot.lane.b32.xlu0 %v836, 73
        %v844 = vpop.permute.xlu0 %843
        %845 = vrot.lane.b32.xlu0 %v837, 73
        %v846 = vpop.permute.xlu0 %845
        %vm847 = vcmask 596992
        %v848 = vsel %vm847, %v842, %v844
        %v849 = vsel %vm847, %v844, %v846
        %853 = vst [vmem:[#allocation2 + $0x138] sm:$0xff] %v848
        %854 = vst [vmem:[#allocation2 + $0x140] sm:$0xff] %v849
        %855 = vst.msk [vmem:[#allocation2 + $0x148] sm:$0xff] %vm581, %v846
        %v856 = vld [vmem:[%s574] sm:$0xff]
        %v857 = vld [vmem:[%s574 + $0x8] sm:$0xff]
        %v858 = vld [vmem:[%s574 + $0x10] sm:$0xff]
        %862 = vrot.lane.b32.xlu0 %v856, 72
        %v863 = vpop.permute.xlu0 %862
        %864 = vrot.lane.b32.xlu0 %v857, 72
        %v865 = vpop.permute.xlu0 %864
        %866 = vrot.lane.b32.xlu0 %v858, 72
        %v867 = vpop.permute.xlu0 %866
        %vm868 = vcmask 588800
        %v869 = vsel %vm868, %v863, %v865
        %v870 = vsel %vm868, %v865, %v867
        %874 = vst [vmem:[#allocation2 + $0x150] sm:$0xff] %v869
        %875 = vst [vmem:[#allocation2 + $0x158] sm:$0xff] %v870
        %876 = vst.msk [vmem:[#allocation2 + $0x160] sm:$0xff] %vm581, %v867
        %v877 = vld [vmem:[%s574] sm:$0xff]
        %v878 = vld [vmem:[%s574 + $0x8] sm:$0xff]
        %v879 = vld [vmem:[%s574 + $0x10] sm:$0xff]
        %883 = vrot.lane.b32.xlu0 %v877, 71
        %v884 = vpop.permute.xlu0 %883
        %885 = vrot.lane.b32.xlu0 %v878, 71
        %v886 = vpop.permute.xlu0 %885
        %887 = vrot.lane.b32.xlu0 %v879, 71
        %v888 = vpop.permute.xlu0 %887
        %vm889 = vcmask 580608
        %v890 = vsel %vm889, %v884, %v886
        %v891 = vsel %vm889, %v886, %v888
        %895 = vst [vmem:[#allocation2 + $0x168] sm:$0xff] %v890
        %896 = vst [vmem:[#allocation2 + $0x170] sm:$0xff] %v891
        %897 = vst.msk [vmem:[#allocation2 + $0x178] sm:$0xff] %vm581, %v888
        %v898 = vld [vmem:[%s1] sm:$0xf]
        %v899 = vld [vmem:[#allocation2] sm:$0xff]
        %v900 = vld [vmem:[#allocation2 + $0x8] sm:$0xff]
        %v901 = vld [vmem:[#allocation2 + $0x10] sm:$0xff]
        %v902 = vld [vmem:[#allocation2 + $0x18] sm:$0xff]
        %v903 = vld [vmem:[#allocation2 + $0x20] sm:$0xff]
        %v904 = vld [vmem:[#allocation2 + $0x28] sm:$0xff]
        %v905 = vld [vmem:[#allocation2 + $0x30] sm:$0xff]
        %v906 = vld [vmem:[#allocation2 + $0x38] sm:$0xff]
        %v907 = vld [vmem:[#allocation2 + $0x40] sm:$0xff]
        %v908 = vld [vmem:[#allocation2 + $0x48] sm:$0xff]
        %v909 = vld [vmem:[#allocation2 + $0x50] sm:$0xff]
        %v910 = vld [vmem:[#allocation2 + $0x58] sm:$0xff]
        %v911 = vld [vmem:[#allocation2 + $0x60] sm:$0xff]
        %v912 = vld [vmem:[#allocation2 + $0x68] sm:$0xff]
        %v913 = vld [vmem:[#allocation2 + $0x70] sm:$0xff]
        %v914 = vld [vmem:[#allocation2 + $0x78] sm:$0xff]
        %v915 = vld [vmem:[#allocation2 + $0x80] sm:$0xff]
        %v916 = vld [vmem:[#allocation2 + $0x88] sm:$0xff]
        %v917 = vld [vmem:[#allocation2 + $0x90] sm:$0xff]
        %v918 = vld [vmem:[#allocation2 + $0x98] sm:$0xff]
        %v919 = vld [vmem:[#allocation2 + $0xa0] sm:$0xff]
        %v920 = vld [vmem:[#allocation2 + $0xa8] sm:$0xff]
        %v921 = vld [vmem:[#allocation2 + $0xb0] sm:$0xff]
        %v922 = vld [vmem:[#allocation2 + $0xb8] sm:$0xff]
        %v923 = vld [vmem:[#allocation2 + $0xc0] sm:$0xff]
        %v924 = vld [vmem:[#allocation2 + $0xc8] sm:$0xff]
        %v925 = vld [vmem:[#allocation2 + $0xd0] sm:$0xff]
        %v926 = vld [vmem:[#allocation2 + $0xd8] sm:$0xff]
        %v927 = vld [vmem:[#allocation2 + $0xe0] sm:$0xff]
        %v928 = vld [vmem:[#allocation2 + $0xe8] sm:$0xff]
        %v929 = vld [vmem:[#allocation2 + $0xf0] sm:$0xff]
        %v930 = vld [vmem:[#allocation2 + $0xf8] sm:$0xff]
        %v931 = vld [vmem:[#allocation2 + $0x100] sm:$0xff]
        %v932 = vld [vmem:[#allocation2 + $0x108] sm:$0xff]
        %v933 = vld [vmem:[#allocation2 + $0x110] sm:$0xff]
        %v934 = vld [vmem:[#allocation2 + $0x118] sm:$0xff]
        %v935 = vld [vmem:[#allocation2 + $0x120] sm:$0xff]
        %v936 = vld [vmem:[#allocation2 + $0x128] sm:$0xff]
        %v937 = vld [vmem:[#allocation2 + $0x130] sm:$0xff]
        %v938 = vld [vmem:[#allocation2 + $0x138] sm:$0xff]
        %v939 = vld [vmem:[#allocation2 + $0x140] sm:$0xff]
        %v940 = vld [vmem:[#allocation2 + $0x148] sm:$0xff]
        %v941 = vld [vmem:[#allocation2 + $0x150] sm:$0xff]
        %v942 = vld [vmem:[#allocation2 + $0x158] sm:$0xff]
        %v943 = vld [vmem:[#allocation2 + $0x160] sm:$0xff]
        %v944 = vld [vmem:[#allocation2 + $0x168] sm:$0xff]
        %v945 = vld [vmem:[#allocation2 + $0x170] sm:$0xff]
        %v946 = vld [vmem:[#allocation2 + $0x178] sm:$0xff]
        %v947 = vpack.c.bf16 %v902, %v899
        %v948 = vpack.c.bf16 %v903, %v900
        %v949 = vpack.c.bf16 %v904, %v901
        %v950 = vpack.c.bf16 %v908, %v905
        %v951 = vpack.c.bf16 %v909, %v906
        %v952 = vpack.c.bf16 %v910, %v907
        %v953 = vpack.c.bf16 %v914, %v911
        %v954 = vpack.c.bf16 %v915, %v912
        %v955 = vpack.c.bf16 %v916, %v913
        %v956 = vpack.c.bf16 %v920, %v917
        %v957 = vpack.c.bf16 %v921, %v918
        %v958 = vpack.c.bf16 %v922, %v919
        %v959 = vpack.c.bf16 %v926, %v923
        %v960 = vpack.c.bf16 %v927, %v924
        %v961 = vpack.c.bf16 %v928, %v925
        %v962 = vpack.c.bf16 %v932, %v929
        %v963 = vpack.c.bf16 %v933, %v930
        %v964 = vpack.c.bf16 %v934, %v931
        %v965 = vpack.c.bf16 %v938, %v935
        %v966 = vpack.c.bf16 %v939, %v936
        %v967 = vpack.c.bf16 %v940, %v937
        %v968 = vpack.c.bf16 %v944, %v941
        %v969 = vpack.c.bf16 %v945, %v942
        %v970 = vpack.c.bf16 %v946, %v943
        %v971 = vld [vmem:[%s2] sm:$0xff]
        %973 = vset.pattern.permute.xlu0 0
        %974 = vperm.xlu0 %973, %v971
        %v975 = vpop.permute.xlu0 %974
        %977 = vmatpush.bf16.msra.mxu0 %v968
        %978 = vmatpush.bf16.msra.mxu0 %v965
        %979 = vmatpush.bf16.msra.mxu0 %v962
        %980 = vmatpush.bf16.msra.mxu0 %v959
        %981 = vmatpush.bf16.msra.mxu0 %v956
        %982 = vmatpush.bf16.msra.mxu0 %v953
        %983 = vmatpush.bf16.msra.mxu0 %v950
        %984 = vmatpush.bf16.msra.mxu0 %v947
        %985 = vmatmul.bf16.gmra.mxu0 %v898
        %v986 = vpop.f32.mrf.mxu0
        %v987 = vadd.f32 %v975, %v986
        %v988 = vpop.f32.mrf.mxu0
        %989 = vdwg.mxu0
        %990 = vmatpush.bf16.msra.mxu0 %v969
        %991 = vmatpush.bf16.msra.mxu0 %v966
        %992 = vmatpush.bf16.msra.mxu0 %v963
        %993 = vmatpush.bf16.msra.mxu0 %v960
        %994 = vmatpush.bf16.msra.mxu0 %v957
        %995 = vmatpush.bf16.msra.mxu0 %v954
        %996 = vmatpush.bf16.msra.mxu0 %v951
        %997 = vmatpush.bf16.msra.mxu0 %v948
        %998 = vmatmul.bf16.gmra.mxu0 %v898
        %v999 = vpop.f32.mrf.mxu0
        %v1000 = vadd.f32 %v975, %v999
        %v1001 = vpop.f32.mrf.mxu0
        %1002 = vdwg.mxu0
        %1003 = vmatpush.bf16.msra.mxu0 %v970
        %1004 = vmatpush.bf16.msra.mxu0 %v967
        %1005 = vmatpush.bf16.msra.mxu0 %v964
        %1006 = vmatpush.bf16.msra.mxu0 %v961
        %1007 = vmatpush.bf16.msra.mxu0 %v958
        %1008 = vmatpush.bf16.msra.mxu0 %v955
        %1009 = vmatpush.bf16.msra.mxu0 %v952
        %1010 = vmatpush.bf16.msra.mxu0 %v949
        %1011 = vmatmul.bf16.gmra.mxu0 %v898
        %v1012 = vpop.f32.mrf.mxu0
        %v1013 = vadd.f32 %v975, %v1012
        %v1014 = vpop.f32.mrf.mxu0
        %1015 = vdwg.mxu0
        %vm1016 = vcmp.ge.f32.partialorder %v987, 0.0
        %vm1017 = vcmp.ge.f32.partialorder %v1000, 0.0
        %vm1018 = vcmp.ge.f32.partialorder %v1013, 0.0
        %v1019 = vmul.f32 %v987, 0.2
        %v1020 = vmul.f32 %v1000, 0.2
        %v1021 = vmul.f32 %v1013, 0.2
        %v1022 = vsel %vm1016, %v987, %v1019
        %v1023 = vsel %vm1017, %v1000, %v1020
        %v1024 = vsel %vm1018, %v1013, %v1021
        %v1025 = vpack.c.bf16 %v1022, %v1022
        %v1026 = vpack.c.bf16 %v1023, %v1023
        %v1027 = vpack.c.bf16 %v1024, %v1024
        %v1028 = vld [vmem:[%s3] sm:$0xf]
        %v1029 = vld [vmem:[%s3 + $0x4] sm:$0xf]
        %v1030 = vld [vmem:[%s3 + $0x8] sm:$0xf]
        %v1031 = vld [vmem:[%s3 + $0xc] sm:$0xf]
        %v1032 = vld [vmem:[%s3 + $0x10] sm:$0xf]
        %v1033 = vld [vmem:[%s3 + $0x14] sm:$0xf]
        %v1034 = vld [vmem:[%s3 + $0x18] sm:$0xf]
        %v1035 = vld [vmem:[%s3 + $0x1c] sm:$0xf]
        %v1036 = vld [vmem:[%s3 + $0x20] sm:$0xf]
        %v1037 = vld [vmem:[%s3 + $0x24] sm:$0xf]
        %v1038 = vld [vmem:[%s3 + $0x28] sm:$0xf]
        %v1039 = vld [vmem:[%s3 + $0x2c] sm:$0xf]
        %v1040 = vld [vmem:[%s3 + $0x30] sm:$0xf]
        %v1041 = vld [vmem:[%s3 + $0x34] sm:$0xf]
        %v1042 = vld [vmem:[%s3 + $0x38] sm:$0xf]
        %v1043 = vld [vmem:[%s3 + $0x3c] sm:$0xf]
        %v1044 = vld [vmem:[%s3 + $0x40] sm:$0xf]
        %v1045 = vld [vmem:[%s3 + $0x44] sm:$0xf]
        %v1046 = vld [vmem:[%s3 + $0x48] sm:$0xf]
        %v1047 = vld [vmem:[%s3 + $0x4c] sm:$0xf]
        %v1048 = vld [vmem:[%s3 + $0x50] sm:$0xf]
        %v1049 = vld [vmem:[%s3 + $0x54] sm:$0xf]
        %v1050 = vld [vmem:[%s3 + $0x58] sm:$0xf]
        %v1051 = vld [vmem:[%s3 + $0x5c] sm:$0xf]
        %v1052 = vld [vmem:[%s3 + $0x60] sm:$0xf]
        %v1053 = vld [vmem:[%s3 + $0x64] sm:$0xf]
        %v1054 = vld [vmem:[%s3 + $0x68] sm:$0xf]
        %v1055 = vld [vmem:[%s3 + $0x6c] sm:$0xf]
        %v1056 = vld [vmem:[%s3 + $0x70] sm:$0xf]
        %v1057 = vld [vmem:[%s3 + $0x74] sm:$0xf]
        %v1058 = vld [vmem:[%s3 + $0x78] sm:$0xf]
        %v1059 = vld [vmem:[%s3 + $0x7c] sm:$0xf]
        %v1060 = vld [vmem:[%s3 + $0x80] sm:$0xf]
        %v1061 = vld [vmem:[%s3 + $0x84] sm:$0x3]
        %v1096 = vunpack.c.l.b16 %v1028
        %v1097 = vunpack.c.l.b16 %v1029
        %v1098 = vunpack.c.l.b16 %v1030
        %v1099 = vunpack.c.l.b16 %v1031
        %v1100 = vunpack.c.l.b16 %v1032
        %v1101 = vunpack.c.l.b16 %v1033
        %v1102 = vunpack.c.l.b16 %v1034
        %v1103 = vunpack.c.l.b16 %v1035
        %v1104 = vunpack.c.l.b16 %v1036
        %v1105 = vunpack.c.l.b16 %v1037
        %v1106 = vunpack.c.l.b16 %v1038
        %v1107 = vunpack.c.l.b16 %v1039
        %v1108 = vunpack.c.l.b16 %v1040
        %v1109 = vunpack.c.l.b16 %v1041
        %v1110 = vunpack.c.l.b16 %v1042
        %v1111 = vunpack.c.l.b16 %v1043
        %v1112 = vunpack.c.l.b16 %v1044
        %v1113 = vunpack.c.l.b16 %v1045
        %v1114 = vunpack.c.l.b16 %v1046
        %v1115 = vunpack.c.l.b16 %v1047
        %v1116 = vunpack.c.l.b16 %v1048
        %v1117 = vunpack.c.l.b16 %v1049
        %v1118 = vunpack.c.l.b16 %v1050
        %v1119 = vunpack.c.l.b16 %v1051
        %v1120 = vunpack.c.l.b16 %v1052
        %v1121 = vunpack.c.l.b16 %v1053
        %v1122 = vunpack.c.l.b16 %v1054
        %v1123 = vunpack.c.l.b16 %v1055
        %v1124 = vunpack.c.l.b16 %v1056
        %v1125 = vunpack.c.l.b16 %v1057
        %v1126 = vunpack.c.l.b16 %v1058
        %v1127 = vunpack.c.l.b16 %v1059
        %v1128 = vunpack.c.l.b16 %v1060
        %v1129 = vunpack.c.l.b16 %v1061
        %v1130 = vpack.c.b16 %v1097, %v1096
        %v1131 = vpack.c.b16 %v1099, %v1098
        %v1132 = vpack.c.b16 %v1101, %v1100
        %v1133 = vpack.c.b16 %v1103, %v1102
        %v1134 = vpack.c.b16 %v1105, %v1104
        %v1135 = vpack.c.b16 %v1107, %v1106
        %v1136 = vpack.c.b16 %v1109, %v1108
        %v1137 = vpack.c.b16 %v1111, %v1110
        %v1138 = vpack.c.b16 %v1113, %v1112
        %v1139 = vpack.c.b16 %v1115, %v1114
        %v1140 = vpack.c.b16 %v1117, %v1116
        %v1141 = vpack.c.b16 %v1119, %v1118
        %v1142 = vpack.c.b16 %v1121, %v1120
        %v1143 = vpack.c.b16 %v1123, %v1122
        %v1144 = vpack.c.b16 %v1125, %v1124
        %v1145 = vpack.c.b16 %v1127, %v1126
        %v1146 = vpack.c.b16 %v1129, %v1128
        %v1164 = vsel %vm581, %v1027, 0
        %vm1166 = vcmask 1044480
        %vm1167 = vcmask 1045504
        %v1168 = vsel %vm1166, 4294967295, 65535
        %v1169 = vsel %vm1167, %v1168, 0
        %v1171 = vand.u32 %v1146, %v1169
        %1173 = vmatpush.bf16.msra.mxu0 %v1137
        %1174 = vmatpush.bf16.msra.mxu0 %v1136
        %1175 = vmatpush.bf16.msra.mxu0 %v1135
        %1176 = vmatpush.bf16.msra.mxu0 %v1134
        %1177 = vmatpush.bf16.msra.mxu0 %v1133
        %1178 = vmatpush.bf16.msra.mxu0 %v1132
        %1179 = vmatpush.bf16.msra.mxu0 %v1131
        %1180 = vmatpush.bf16.msra.mxu0 %v1130
        %1181 = vmatmul.bf16.gmra.mxu0 %v1025
        %v1182 = vpop.f32.mrf.mxu0
        %v1183 = vadd.f32 0.0, %v1182
        %v1184 = vpop.f32.mrf.mxu0
        %1185 = vdwg.mxu0
        %1186 = vmatpush.bf16.msra.mxu0 %v1145
        %1187 = vmatpush.bf16.msra.mxu0 %v1144
        %1188 = vmatpush.bf16.msra.mxu0 %v1143
        %1189 = vmatpush.bf16.msra.mxu0 %v1142
        %1190 = vmatpush.bf16.msra.mxu0 %v1141
        %1191 = vmatpush.bf16.msra.mxu0 %v1140
        %1192 = vmatpush.bf16.msra.mxu0 %v1139
        %1193 = vmatpush.bf16.msra.mxu0 %v1138
        %1194 = vmatmul.bf16.gmra.mxu0 %v1026
        %v1195 = vpop.f32.mrf.mxu0
        %v1196 = vadd.f32 %v1183, %v1195
        %v1197 = vpop.f32.mrf.mxu0
        %1198 = vdwg.mxu0
        %1199 = vmatpush.bf16.msra.mxu0 0
        %1200 = vmatpush.bf16.msra.mxu0 0
        %1201 = vmatpush.bf16.msra.mxu0 0
        %1202 = vmatpush.bf16.msra.mxu0 0
        %1203 = vmatpush.bf16.msra.mxu0 0
        %1204 = vmatpush.bf16.msra.mxu0 0
        %1205 = vmatpush.bf16.msra.mxu0 0
        %1206 = vmatpush.bf16.msra.mxu0 %v1171
        %1207 = vmatmul.bf16.gmra.mxu0 %v1164
        %v1208 = vpop.f32.mrf.mxu0
        %v1209 = vadd.f32 %v1196, %v1208
        %v1210 = vpop.f32.mrf.mxu0
        %1211 = vdwg.mxu0
        %vm1212 = vcmask 662528
        %1213 = vst.msk [vmem:[#allocation5] sm:$0xff] %vm1212, %v1209
        %v1214 = vld [vmem:[#allocation5] sm:$0xff]
        %vm1215 = vcmask 416768
        %1216 = vst.msk [vmem:[#allocation3] sm:$0xff] %vm1215, %v1214
        %v1217 = vld [vmem:[#allocation5] sm:$0xff]
        %1219 = vrot.lane.b32.xlu0 %v1217, 127
        %v1220 = vpop.permute.xlu0 %1219
        %1222 = vst.msk [vmem:[#allocation3 + $0x8] sm:$0xff] %vm1215, %v1220
        %v1223 = vld [vmem:[#allocation5] sm:$0xff]
        %1225 = vrot.lane.b32.xlu0 %v1223, 126
        %v1226 = vpop.permute.xlu0 %1225
        %1228 = vst.msk [vmem:[#allocation3 + $0x10] sm:$0xff] %vm1215, %v1226
        %v1229 = vld [vmem:[#allocation5] sm:$0xff]
        %1231 = vrot.lane.b32.xlu0 %v1229, 125
        %v1232 = vpop.permute.xlu0 %1231
        %1234 = vst.msk [vmem:[#allocation3 + $0x18] sm:$0xff] %vm1215, %v1232
        %v1235 = vld [vmem:[#allocation5] sm:$0xff]
        %1237 = vrot.lane.b32.xlu0 %v1235, 119
        %v1238 = vpop.permute.xlu0 %1237
        %1240 = vst.msk [vmem:[#allocation3 + $0x20] sm:$0xff] %vm1215, %v1238
        %v1241 = vld [vmem:[#allocation5] sm:$0xff]
        %1243 = vrot.lane.b32.xlu0 %v1241, 118
        %v1244 = vpop.permute.xlu0 %1243
        %1246 = vst.msk [vmem:[#allocation3 + $0x28] sm:$0xff] %vm1215, %v1244
        %v1247 = vld [vmem:[#allocation5] sm:$0xff]
        %1249 = vrot.lane.b32.xlu0 %v1247, 117
        %v1250 = vpop.permute.xlu0 %1249
        %1252 = vst.msk [vmem:[#allocation3 + $0x30] sm:$0xff] %vm1215, %v1250
        %v1253 = vld [vmem:[#allocation5] sm:$0xff]
        %1255 = vrot.lane.b32.xlu0 %v1253, 116
        %v1256 = vpop.permute.xlu0 %1255
        %1258 = vst.msk [vmem:[#allocation3 + $0x38] sm:$0xff] %vm1215, %v1256
        %v1259 = vld [vmem:[#allocation5] sm:$0xff]
        %1261 = vrot.lane.b32.xlu0 %v1259, 110
        %v1262 = vpop.permute.xlu0 %1261
        %1264 = vst.msk [vmem:[#allocation3 + $0x40] sm:$0xff] %vm1215, %v1262
        %v1265 = vld [vmem:[#allocation5] sm:$0xff]
        %1267 = vrot.lane.b32.xlu0 %v1265, 109
        %v1268 = vpop.permute.xlu0 %1267
        %1270 = vst.msk [vmem:[#allocation3 + $0x48] sm:$0xff] %vm1215, %v1268
        %v1271 = vld [vmem:[#allocation5] sm:$0xff]
        %1273 = vrot.lane.b32.xlu0 %v1271, 108
        %v1274 = vpop.permute.xlu0 %1273
        %1276 = vst.msk [vmem:[#allocation3 + $0x50] sm:$0xff] %vm1215, %v1274
        %v1277 = vld [vmem:[#allocation5] sm:$0xff]
        %1279 = vrot.lane.b32.xlu0 %v1277, 107
        %v1280 = vpop.permute.xlu0 %1279
        %1282 = vst.msk [vmem:[#allocation3 + $0x58] sm:$0xff] %vm1215, %v1280
        %v1283 = vld [vmem:[#allocation5] sm:$0xff]
        %1285 = vrot.lane.b32.xlu0 %v1283, 101
        %v1286 = vpop.permute.xlu0 %1285
        %1288 = vst.msk [vmem:[#allocation3 + $0x60] sm:$0xff] %vm1215, %v1286
        %v1289 = vld [vmem:[#allocation5] sm:$0xff]
        %1291 = vrot.lane.b32.xlu0 %v1289, 100
        %v1292 = vpop.permute.xlu0 %1291
        %1294 = vst.msk [vmem:[#allocation3 + $0x68] sm:$0xff] %vm1215, %v1292
        %v1295 = vld [vmem:[#allocation5] sm:$0xff]
        %1297 = vrot.lane.b32.xlu0 %v1295, 99
        %v1298 = vpop.permute.xlu0 %1297
        %1300 = vst.msk [vmem:[#allocation3 + $0x70] sm:$0xff] %vm1215, %v1298
        %v1301 = vld [vmem:[#allocation5] sm:$0xff]
        %1303 = vrot.lane.b32.xlu0 %v1301, 98
        %v1304 = vpop.permute.xlu0 %1303
        %1306 = vst.msk [vmem:[#allocation3 + $0x78] sm:$0xff] %vm1215, %v1304
        %v1307 = vld [vmem:[%s4] sm:$0xf]
        %v1308 = vld [vmem:[%s4 + $0x4] sm:$0xf]
        %v1309 = vld [vmem:[#allocation3] sm:$0xff]
        %v1310 = vld [vmem:[#allocation3 + $0x8] sm:$0xff]
        %v1311 = vld [vmem:[#allocation3 + $0x10] sm:$0xff]
        %v1312 = vld [vmem:[#allocation3 + $0x18] sm:$0xff]
        %v1313 = vld [vmem:[#allocation3 + $0x20] sm:$0xff]
        %v1314 = vld [vmem:[#allocation3 + $0x28] sm:$0xff]
        %v1315 = vld [vmem:[#allocation3 + $0x30] sm:$0xff]
        %v1316 = vld [vmem:[#allocation3 + $0x38] sm:$0xff]
        %v1317 = vld [vmem:[#allocation3 + $0x40] sm:$0xff]
        %v1318 = vld [vmem:[#allocation3 + $0x48] sm:$0xff]
        %v1319 = vld [vmem:[#allocation3 + $0x50] sm:$0xff]
        %v1320 = vld [vmem:[#allocation3 + $0x58] sm:$0xff]
        %v1321 = vld [vmem:[#allocation3 + $0x60] sm:$0xff]
        %v1322 = vld [vmem:[#allocation3 + $0x68] sm:$0xff]
        %v1323 = vld [vmem:[#allocation3 + $0x70] sm:$0xff]
        %v1324 = vld [vmem:[#allocation3 + $0x78] sm:$0xff]
        %v1325 = vpack.c.bf16 %v1310, %v1309
        %v1326 = vpack.c.bf16 %v1312, %v1311
        %v1327 = vpack.c.bf16 %v1314, %v1313
        %v1328 = vpack.c.bf16 %v1316, %v1315
        %v1329 = vpack.c.bf16 %v1318, %v1317
        %v1330 = vpack.c.bf16 %v1320, %v1319
        %v1331 = vpack.c.bf16 %v1322, %v1321
        %v1332 = vpack.c.bf16 %v1324, %v1323
        %v1333 = vld [vmem:[%s5] sm:$0xff]
        %v1334 = vld [vmem:[%s5 + $0x8] sm:$0xff]
        %1336 = vset.pattern.permute.xlu0 0
        %1337 = vperm.xlu0 %1336, %v1333
        %v1338 = vpop.permute.xlu0 %1337
        %1341 = vset.pattern.permute.xlu0 0
        %1342 = vperm.xlu0 %1341, %v1334
        %v1343 = vpop.permute.xlu0 %1342
        %v1347 = vunpack.c.l.b16 %v1307
        %v1348 = vunpack.c.l.b16 %v1308
        %v1349 = vpack.c.b16 %v1348, %v1347
        %1351 = vmatpush.bf16.msra.mxu0 %v1332
        %1352 = vmatpush.bf16.msra.mxu0 %v1331
        %1353 = vmatpush.bf16.msra.mxu0 %v1330
        %1354 = vmatpush.bf16.msra.mxu0 %v1329
        %1355 = vmatpush.bf16.msra.mxu0 %v1328
        %1356 = vmatpush.bf16.msra.mxu0 %v1327
        %1357 = vmatpush.bf16.msra.mxu0 %v1326
        %1358 = vmatpush.bf16.msra.mxu0 %v1325
        %1359 = vmatmul.bf16.gmra.mxu0 %v1349
        %v1360 = vpop.f32.mrf.mxu0
        %v1361 = vadd.f32 %v1338, %v1360
        %v1362 = vpop.f32.mrf.mxu0
        %v1363 = vadd.f32 %v1343, %v1362
        %1364 = vdwg.mxu0
        %v1365 = vld [vmem:[%s8] sm:$0x1]
        %v1367 = vperm.slane %v1365, 0
        %v1369 = vmul.f32 %v1361, %v1367
        %v1370 = vmul.f32 %v1363, %v1367
        %v1371 = vsel %vm1215, %v1369, 0.0
        %1372 = vadd.xlane.f32.xlu0 %v1371
        %v1373 = vpop.xlane.xlu0 %1372
        %v1374 = vsel %vm1215, %v1370, 0.0
        %1375 = vadd.xlane.f32.xlu0 %v1374
        %v1376 = vpop.xlane.xlu0 %1375
        %v1377 = vmul.f32 %v1373, 0.027777778
        %v1378 = vmul.f32 %v1376, 0.027777778
        %v1379 = vsub.f32 %v1361, %v1377
        %v1380 = vsub.f32 %v1363, %v1378
        %v1381 = vmul.f32 %v1379, %v1379
        %v1382 = vmul.f32 %v1380, %v1380
        %v1383 = vmul.f32 %v1381, %v1367
        %v1384 = vmul.f32 %v1382, %v1367
        %v1385 = vsel %vm1215, %v1383, 0.0
        %1386 = vadd.xlane.f32.xlu0 %v1385
        %v1387 = vpop.xlane.xlu0 %1386
        %v1388 = vsel %vm1215, %v1384, 0.0
        %1389 = vadd.xlane.f32.xlu0 %v1388
        %v1390 = vpop.xlane.xlu0 %1389
        %v1391 = vmul.f32 %v1387, 0.027777778
        %v1392 = vmul.f32 %v1390, 0.027777778
        %v1393 = vadd.f32 %v1391, 1e-05
        %v1394 = vadd.f32 %v1392, 1e-05
        %v1395 = vrsqrt.pop %v1393
        %v1396 = vmul.f32 %v1395, %v1393
        %v1397 = vmul.f32 %v1396, %v1395
        %v1398 = vmul.f32 0.5, %v1397
        %v1399 = vsub.f32 1.5, %v1398
        %v1400 = vmul.f32 %v1395, %v1399
        %vm1401 = vweird.f32 %v1393
        %vm1402 = vweird.f32 %v1395
        %vm1403 = vmor %vm1401, %vm1402
        %v1404 = vsel %vm1403, %v1395, %v1400
        %v1405 = vrsqrt.pop %v1394
        %v1406 = vmul.f32 %v1405, %v1394
        %v1407 = vmul.f32 %v1406, %v1405
        %v1408 = vmul.f32 0.5, %v1407
        %v1409 = vsub.f32 1.5, %v1408
        %v1410 = vmul.f32 %v1405, %v1409
        %vm1411 = vweird.f32 %v1394
        %vm1412 = vweird.f32 %v1405
        %vm1413 = vmor %vm1411, %vm1412
        %v1414 = vsel %vm1413, %v1405, %v1410
        %v1415 = vmul.f32 %v1379, %v1404
        %v1416 = vmul.f32 %v1380, %v1414
        %v1417 = vld [vmem:[%s6] sm:$0xff]
        %v1418 = vld [vmem:[%s6 + $0x8] sm:$0xff]
        %1420 = vset.pattern.permute.xlu0 0
        %1421 = vperm.xlu0 %1420, %v1417
        %v1422 = vpop.permute.xlu0 %1421
        %1425 = vset.pattern.permute.xlu0 0
        %1426 = vperm.xlu0 %1425, %v1418
        %v1427 = vpop.permute.xlu0 %1426
        %v1429 = vmul.f32 %v1415, %v1422
        %v1430 = vmul.f32 %v1416, %v1427
        %v1431 = vld [vmem:[%s7] sm:$0xff]
        %v1432 = vld [vmem:[%s7 + $0x8] sm:$0xff]
        %1434 = vset.pattern.permute.xlu0 0
        %1435 = vperm.xlu0 %1434, %v1431
        %v1436 = vpop.permute.xlu0 %1435
        %1439 = vset.pattern.permute.xlu0 0
        %1440 = vperm.xlu0 %1439, %v1432
        %v1441 = vpop.permute.xlu0 %1440
        %v1443 = vadd.f32 %v1429, %v1436
        %v1444 = vadd.f32 %v1430, %v1441
        %vm1445 = vcmp.ge.f32.partialorder %v1443, 0.0
        %vm1446 = vcmp.ge.f32.partialorder %v1444, 0.0
        %v1447 = vmul.f32 %v1443, 0.2
        %v1448 = vmul.f32 %v1444, 0.2
        %v1449 = vsel %vm1445, %v1443, %v1447
        %v1450 = vsel %vm1446, %v1444, %v1448
        %v1451 = vpack.c.bf16 %v1450, %v1449
        %v1452 = vld [vmem:[%s9] sm:$0xf]
        %v1453 = vld [vmem:[%s9 + $0x4] sm:$0xf]
        %v1454 = vld [vmem:[%s9 + $0x8] sm:$0xf]
        %v1455 = vld [vmem:[%s9 + $0xc] sm:$0xf]
        %v1456 = vld [vmem:[%s9 + $0x10] sm:$0xf]
        %v1457 = vld [vmem:[%s9 + $0x14] sm:$0xf]
        %v1458 = vld [vmem:[%s9 + $0x18] sm:$0x3]
        %v1466 = vunpack.c.l.b16 %v1452
        %v1467 = vunpack.c.l.b16 %v1453
        %v1468 = vunpack.c.l.b16 %v1454
        %v1469 = vunpack.c.l.b16 %v1455
        %v1470 = vunpack.c.l.b16 %v1456
        %v1471 = vunpack.c.l.b16 %v1457
        %v1472 = vunpack.c.l.b16 %v1458
        %v1473 = vpack.c.b16 %v1467, %v1466
        %v1474 = vpack.c.b16 %v1469, %v1468
        %v1475 = vpack.c.b16 %v1471, %v1470
        %v1476 = vpack.c.b16 %v1472, %v1472
        %v1481 = vsel %vm1215, %v1451, 0
        %vm1483 = vcmask 1040384
        %vm1484 = vcmask 1041408
        %v1485 = vsel %vm1483, 4294967295, 65535
        %v1486 = vsel %vm1484, %v1485, 0
        %v1488 = vand.u32 %v1476, %v1486
        %1490 = vmatpush.bf16.msra.mxu0 0
        %1491 = vmatpush.bf16.msra.mxu0 0
        %1492 = vmatpush.bf16.msra.mxu0 0
        %1493 = vmatpush.bf16.msra.mxu0 0
        %1494 = vmatpush.bf16.msra.mxu0 %v1488
        %1495 = vmatpush.bf16.msra.mxu0 %v1475
        %1496 = vmatpush.bf16.msra.mxu0 %v1474
        %1497 = vmatpush.bf16.msra.mxu0 %v1473
        %1498 = vmatmul.bf16.gmra.mxu0 %v1481
        %v1499 = vpop.f32.mrf.mxu0
        %v1500 = vadd.f32 0.0, %v1499
        %v1501 = vpop.f32.mrf.mxu0
        %v1502 = vadd.f32 0.0, %v1501
        %1503 = vdwg.mxu0
        %vm1504 = vcmask 203776
        %1505 = vst.msk [vmem:[#allocation6] sm:$0xff] %vm1504, %v1500
        %1506 = vst.msk [vmem:[#allocation6 + $0x8] sm:$0xff] %vm1504, %v1502
        %v1507 = vld [vmem:[#allocation6] sm:$0xff]
        %v1508 = vld [vmem:[#allocation6 + $0x8] sm:$0xff]
        %vm1509 = vcmask 56320
        %1510 = vst.msk [vmem:[#allocation4] sm:$0xff] %vm1509, %v1507
        %1511 = vst.msk [vmem:[#allocation4 + $0x8] sm:$0xff] %vm1509, %v1508
        %v1512 = vld [vmem:[#allocation6] sm:$0xff]
        %v1513 = vld [vmem:[#allocation6 + $0x8] sm:$0xff]
        %1516 = vrot.lane.b32.xlu0 %v1512, 127
        %v1517 = vpop.permute.xlu0 %1516
        %1518 = vrot.lane.b32.xlu0 %v1513, 127
        %v1519 = vpop.permute.xlu0 %1518
        %1522 = vst.msk [vmem:[#allocation4 + $0x10] sm:$0xff] %vm1509, %v1517
        %1523 = vst.msk [vmem:[#allocation4 + $0x18] sm:$0xff] %vm1509, %v1519
        %v1524 = vld [vmem:[#allocation6] sm:$0xff]
        %v1525 = vld [vmem:[#allocation6 + $0x8] sm:$0xff]
        %1528 = vrot.lane.b32.xlu0 %v1524, 126
        %v1529 = vpop.permute.xlu0 %1528
        %1530 = vrot.lane.b32.xlu0 %v1525, 126
        %v1531 = vpop.permute.xlu0 %1530
        %1534 = vst.msk [vmem:[#allocation4 + $0x20] sm:$0xff] %vm1509, %v1529
        %1535 = vst.msk [vmem:[#allocation4 + $0x28] sm:$0xff] %vm1509, %v1531
        %v1536 = vld [vmem:[#allocation6] sm:$0xff]
        %v1537 = vld [vmem:[#allocation6 + $0x8] sm:$0xff]
        %1540 = vrot.lane.b32.xlu0 %v1536, 125
        %v1541 = vpop.permute.xlu0 %1540
        %1542 = vrot.lane.b32.xlu0 %v1537, 125
        %v1543 = vpop.permute.xlu0 %1542
        %1546 = vst.msk [vmem:[#allocation4 + $0x30] sm:$0xff] %vm1509, %v1541
        %1547 = vst.msk [vmem:[#allocation4 + $0x38] sm:$0xff] %vm1509, %v1543
        %v1548 = vld [vmem:[#allocation6] sm:$0xff]
        %v1549 = vld [vmem:[#allocation6 + $0x8] sm:$0xff]
        %1552 = vrot.lane.b32.xlu0 %v1548, 123
        %v1553 = vpop.permute.xlu0 %1552
        %1554 = vrot.lane.b32.xlu0 %v1549, 123
        %v1555 = vpop.permute.xlu0 %1554
        %1558 = vst.msk [vmem:[#allocation4 + $0x40] sm:$0xff] %vm1509, %v1553
        %1559 = vst.msk [vmem:[#allocation4 + $0x48] sm:$0xff] %vm1509, %v1555
        %v1560 = vld [vmem:[#allocation6] sm:$0xff]
        %v1561 = vld [vmem:[#allocation6 + $0x8] sm:$0xff]
        %1564 = vrot.lane.b32.xlu0 %v1560, 122
        %v1565 = vpop.permute.xlu0 %1564
        %1566 = vrot.lane.b32.xlu0 %v1561, 122
        %v1567 = vpop.permute.xlu0 %1566
        %1570 = vst.msk [vmem:[#allocation4 + $0x50] sm:$0xff] %vm1509, %v1565
        %1571 = vst.msk [vmem:[#allocation4 + $0x58] sm:$0xff] %vm1509, %v1567
        %v1572 = vld [vmem:[#allocation6] sm:$0xff]
        %v1573 = vld [vmem:[#allocation6 + $0x8] sm:$0xff]
        %1576 = vrot.lane.b32.xlu0 %v1572, 121
        %v1577 = vpop.permute.xlu0 %1576
        %1578 = vrot.lane.b32.xlu0 %v1573, 121
        %v1579 = vpop.permute.xlu0 %1578
        %1582 = vst.msk [vmem:[#allocation4 + $0x60] sm:$0xff] %vm1509, %v1577
        %1583 = vst.msk [vmem:[#allocation4 + $0x68] sm:$0xff] %vm1509, %v1579
        %v1584 = vld [vmem:[#allocation6] sm:$0xff]
        %v1585 = vld [vmem:[#allocation6 + $0x8] sm:$0xff]
        %1588 = vrot.lane.b32.xlu0 %v1584, 120
        %v1589 = vpop.permute.xlu0 %1588
        %1590 = vrot.lane.b32.xlu0 %v1585, 120
        %v1591 = vpop.permute.xlu0 %1590
        %1594 = vst.msk [vmem:[#allocation4 + $0x70] sm:$0xff] %vm1509, %v1589
        %1595 = vst.msk [vmem:[#allocation4 + $0x78] sm:$0xff] %vm1509, %v1591
        %v1596 = vld [vmem:[#allocation6] sm:$0xff]
        %v1597 = vld [vmem:[#allocation6 + $0x8] sm:$0xff]
        %1600 = vrot.lane.b32.xlu0 %v1596, 118
        %v1601 = vpop.permute.xlu0 %1600
        %1602 = vrot.lane.b32.xlu0 %v1597, 118
        %v1603 = vpop.permute.xlu0 %1602
        %1606 = vst.msk [vmem:[#allocation4 + $0x80] sm:$0xff] %vm1509, %v1601
        %1607 = vst.msk [vmem:[#allocation4 + $0x88] sm:$0xff] %vm1509, %v1603
        %v1608 = vld [vmem:[#allocation6] sm:$0xff]
        %v1609 = vld [vmem:[#allocation6 + $0x8] sm:$0xff]
        %1612 = vrot.lane.b32.xlu0 %v1608, 117
        %v1613 = vpop.permute.xlu0 %1612
        %1614 = vrot.lane.b32.xlu0 %v1609, 117
        %v1615 = vpop.permute.xlu0 %1614
        %1618 = vst.msk [vmem:[#allocation4 + $0x90] sm:$0xff] %vm1509, %v1613
        %1619 = vst.msk [vmem:[#allocation4 + $0x98] sm:$0xff] %vm1509, %v1615
        %v1620 = vld [vmem:[#allocation6] sm:$0xff]
        %v1621 = vld [vmem:[#allocation6 + $0x8] sm:$0xff]
        %1624 = vrot.lane.b32.xlu0 %v1620, 116
        %v1625 = vpop.permute.xlu0 %1624
        %1626 = vrot.lane.b32.xlu0 %v1621, 116
        %v1627 = vpop.permute.xlu0 %1626
        %1630 = vst.msk [vmem:[#allocation4 + $0xa0] sm:$0xff] %vm1509, %v1625
        %1631 = vst.msk [vmem:[#allocation4 + $0xa8] sm:$0xff] %vm1509, %v1627
        %v1632 = vld [vmem:[#allocation6] sm:$0xff]
        %v1633 = vld [vmem:[#allocation6 + $0x8] sm:$0xff]
        %1636 = vrot.lane.b32.xlu0 %v1632, 115
        %v1637 = vpop.permute.xlu0 %1636
        %1638 = vrot.lane.b32.xlu0 %v1633, 115
        %v1639 = vpop.permute.xlu0 %1638
        %1642 = vst.msk [vmem:[#allocation4 + $0xb0] sm:$0xff] %vm1509, %v1637
        %1643 = vst.msk [vmem:[#allocation4 + $0xb8] sm:$0xff] %vm1509, %v1639
        %v1644 = vld [vmem:[#allocation6] sm:$0xff]
        %v1645 = vld [vmem:[#allocation6 + $0x8] sm:$0xff]
        %1648 = vrot.lane.b32.xlu0 %v1644, 113
        %v1649 = vpop.permute.xlu0 %1648
        %1650 = vrot.lane.b32.xlu0 %v1645, 113
        %v1651 = vpop.permute.xlu0 %1650
        %1654 = vst.msk [vmem:[#allocation4 + $0xc0] sm:$0xff] %vm1509, %v1649
        %1655 = vst.msk [vmem:[#allocation4 + $0xc8] sm:$0xff] %vm1509, %v1651
        %v1656 = vld [vmem:[#allocation6] sm:$0xff]
        %v1657 = vld [vmem:[#allocation6 + $0x8] sm:$0xff]
        %1660 = vrot.lane.b32.xlu0 %v1656, 112
        %v1661 = vpop.permute.xlu0 %1660
        %1662 = vrot.lane.b32.xlu0 %v1657, 112
        %v1663 = vpop.permute.xlu0 %1662
        %1666 = vst.msk [vmem:[#allocation4 + $0xd0] sm:$0xff] %vm1509, %v1661
        %1667 = vst.msk [vmem:[#allocation4 + $0xd8] sm:$0xff] %vm1509, %v1663
        %v1668 = vld [vmem:[#allocation6] sm:$0xff]
        %v1669 = vld [vmem:[#allocation6 + $0x8] sm:$0xff]
        %1672 = vrot.lane.b32.xlu0 %v1668, 111
        %v1673 = vpop.permute.xlu0 %1672
        %1674 = vrot.lane.b32.xlu0 %v1669, 111
        %v1675 = vpop.permute.xlu0 %1674
        %1678 = vst.msk [vmem:[#allocation4 + $0xe0] sm:$0xff] %vm1509, %v1673
        %1679 = vst.msk [vmem:[#allocation4 + $0xe8] sm:$0xff] %vm1509, %v1675
        %v1680 = vld [vmem:[#allocation6] sm:$0xff]
        %v1681 = vld [vmem:[#allocation6 + $0x8] sm:$0xff]
        %1684 = vrot.lane.b32.xlu0 %v1680, 110
        %v1685 = vpop.permute.xlu0 %1684
        %1686 = vrot.lane.b32.xlu0 %v1681, 110
        %v1687 = vpop.permute.xlu0 %1686
        %1690 = vst.msk [vmem:[#allocation4 + $0xf0] sm:$0xff] %vm1509, %v1685
        %1691 = vst.msk [vmem:[#allocation4 + $0xf8] sm:$0xff] %vm1509, %v1687
        %v1692 = vld [vmem:[%s10] sm:$0xff]
        %v1693 = vld [vmem:[%s10 + $0x8] sm:$0xff]
        %v1694 = vld [vmem:[%s10 + $0x10] sm:$0xff]
        %v1695 = vld [vmem:[%s10 + $0x18] sm:$0xff]
        %v1696 = vld [vmem:[#allocation4] sm:$0xff]
        %v1697 = vld [vmem:[#allocation4 + $0x8] sm:$0xff]
        %v1698 = vld [vmem:[#allocation4 + $0x10] sm:$0xff]
        %v1699 = vld [vmem:[#allocation4 + $0x18] sm:$0xff]
        %v1700 = vld [vmem:[#allocation4 + $0x20] sm:$0xff]
        %v1701 = vld [vmem:[#allocation4 + $0x28] sm:$0xff]
        %v1702 = vld [vmem:[#allocation4 + $0x30] sm:$0xff]
        %v1703 = vld [vmem:[#allocation4 + $0x38] sm:$0xff]
        %v1704 = vld [vmem:[#allocation4 + $0x40] sm:$0xff]
        %v1705 = vld [vmem:[#allocation4 + $0x48] sm:$0xff]
        %v1706 = vld [vmem:[#allocation4 + $0x50] sm:$0xff]
        %v1707 = vld [vmem:[#allocation4 + $0x58] sm:$0xff]
        %v1708 = vld [vmem:[#allocation4 + $0x60] sm:$0xff]
        %v1709 = vld [vmem:[#allocation4 + $0x68] sm:$0xff]
        %v1710 = vld [vmem:[#allocation4 + $0x70] sm:$0xff]
        %v1711 = vld [vmem:[#allocation4 + $0x78] sm:$0xff]
        %v1712 = vld [vmem:[#allocation4 + $0x80] sm:$0xff]
        %v1713 = vld [vmem:[#allocation4 + $0x88] sm:$0xff]
        %v1714 = vld [vmem:[#allocation4 + $0x90] sm:$0xff]
        %v1715 = vld [vmem:[#allocation4 + $0x98] sm:$0xff]
        %v1716 = vld [vmem:[#allocation4 + $0xa0] sm:$0xff]
        %v1717 = vld [vmem:[#allocation4 + $0xa8] sm:$0xff]
        %v1718 = vld [vmem:[#allocation4 + $0xb0] sm:$0xff]
        %v1719 = vld [vmem:[#allocation4 + $0xb8] sm:$0xff]
        %v1720 = vld [vmem:[#allocation4 + $0xc0] sm:$0xff]
        %v1721 = vld [vmem:[#allocation4 + $0xc8] sm:$0xff]
        %v1722 = vld [vmem:[#allocation4 + $0xd0] sm:$0xff]
        %v1723 = vld [vmem:[#allocation4 + $0xd8] sm:$0xff]
        %v1724 = vld [vmem:[#allocation4 + $0xe0] sm:$0xff]
        %v1725 = vld [vmem:[#allocation4 + $0xe8] sm:$0xff]
        %v1726 = vld [vmem:[#allocation4 + $0xf0] sm:$0xff]
        %v1727 = vld [vmem:[#allocation4 + $0xf8] sm:$0xff]
        %v1728 = vpack.c.bf16 %v1697, %v1696
        %v1729 = vpack.c.bf16 %v1699, %v1698
        %v1730 = vpack.c.bf16 %v1701, %v1700
        %v1731 = vpack.c.bf16 %v1703, %v1702
        %v1732 = vpack.c.bf16 %v1705, %v1704
        %v1733 = vpack.c.bf16 %v1707, %v1706
        %v1734 = vpack.c.bf16 %v1709, %v1708
        %v1735 = vpack.c.bf16 %v1711, %v1710
        %v1736 = vpack.c.bf16 %v1713, %v1712
        %v1737 = vpack.c.bf16 %v1715, %v1714
        %v1738 = vpack.c.bf16 %v1717, %v1716
        %v1739 = vpack.c.bf16 %v1719, %v1718
        %v1740 = vpack.c.bf16 %v1721, %v1720
        %v1741 = vpack.c.bf16 %v1723, %v1722
        %v1742 = vpack.c.bf16 %v1725, %v1724
        %v1743 = vpack.c.bf16 %v1727, %v1726
        %v1744 = vld [vmem:[%s11] sm:$0xff]
        %v1745 = vld [vmem:[%s11 + $0x8] sm:$0xff]
        %v1746 = vld [vmem:[%s11 + $0x10] sm:$0xff]
        %v1747 = vld [vmem:[%s11 + $0x18] sm:$0xff]
        %1749 = vset.pattern.permute.xlu0 0
        %1750 = vperm.xlu0 %1749, %v1744
        %v1751 = vpop.permute.xlu0 %1750
        %1754 = vset.pattern.permute.xlu0 0
        %1755 = vperm.xlu0 %1754, %v1745
        %v1756 = vpop.permute.xlu0 %1755
        %1759 = vset.pattern.permute.xlu0 0
        %1760 = vperm.xlu0 %1759, %v1746
        %v1761 = vpop.permute.xlu0 %1760
        %1764 = vset.pattern.permute.xlu0 0
        %1765 = vperm.xlu0 %1764, %v1747
        %v1766 = vpop.permute.xlu0 %1765
        %v1772 = vunpack.c.l.b16 %v1692
        %v1773 = vunpack.c.h.b16 %v1692
        %v1774 = vunpack.c.l.b16 %v1693
        %v1775 = vunpack.c.h.b16 %v1693
        %v1776 = vunpack.c.l.b16 %v1694
        %v1777 = vunpack.c.h.b16 %v1694
        %v1778 = vunpack.c.l.b16 %v1695
        %v1779 = vunpack.c.h.b16 %v1695
        %v1780 = vpack.c.b16 %v1774, %v1772
        %v1781 = vpack.c.b16 %v1775, %v1773
        %v1782 = vpack.c.b16 %v1778, %v1776
        %v1783 = vpack.c.b16 %v1779, %v1777
        %1788 = vmatpush.bf16.msra.mxu0 %v1735
        %1789 = vmatpush.bf16.msra.mxu0 %v1734
        %1790 = vmatpush.bf16.msra.mxu0 %v1733
        %1791 = vmatpush.bf16.msra.mxu0 %v1732
        %1792 = vmatpush.bf16.msra.mxu0 %v1731
        %1793 = vmatpush.bf16.msra.mxu0 %v1730
        %1794 = vmatpush.bf16.msra.mxu0 %v1729
        %1795 = vmatpush.bf16.msra.mxu0 %v1728
        %1796 = vmatmul.bf16.gmra.mxu0 %v1780
        %v1797 = vpop.f32.mrf.mxu0
        %v1798 = vadd.f32 %v1751, %v1797
        %v1799 = vpop.f32.mrf.mxu0
        %v1800 = vadd.f32 %v1756, %v1799
        %1801 = vmatmul.bf16.gmra.mxu0 %v1782
        %v1802 = vpop.f32.mrf.mxu0
        %v1803 = vadd.f32 %v1761, %v1802
        %v1804 = vpop.f32.mrf.mxu0
        %v1805 = vadd.f32 %v1766, %v1804
        %1806 = vdwg.mxu0
        %1807 = vmatpush.bf16.msra.mxu0 %v1743
        %1808 = vmatpush.bf16.msra.mxu0 %v1742
        %1809 = vmatpush.bf16.msra.mxu0 %v1741
        %1810 = vmatpush.bf16.msra.mxu0 %v1740
        %1811 = vmatpush.bf16.msra.mxu0 %v1739
        %1812 = vmatpush.bf16.msra.mxu0 %v1738
        %1813 = vmatpush.bf16.msra.mxu0 %v1737
        %1814 = vmatpush.bf16.msra.mxu0 %v1736
        %1815 = vmatmul.bf16.gmra.mxu0 %v1781
        %v1816 = vpop.f32.mrf.mxu0
        %v1817 = vadd.f32 %v1798, %v1816
        %v1818 = vpop.f32.mrf.mxu0
        %v1819 = vadd.f32 %v1800, %v1818
        %1820 = vmatmul.bf16.gmra.mxu0 %v1783
        %v1821 = vpop.f32.mrf.mxu0
        %v1822 = vadd.f32 %v1803, %v1821
        %v1823 = vpop.f32.mrf.mxu0
        %v1824 = vadd.f32 %v1805, %v1823
        %1825 = vdwg.mxu0
        %v1826 = vld [vmem:[%s14] sm:$0x1]
        %v1828 = vperm.slane %v1826, 0
        %v1830 = vmul.f32 %v1817, %v1828
        %v1831 = vmul.f32 %v1819, %v1828
        %v1832 = vmul.f32 %v1822, %v1828
        %v1833 = vmul.f32 %v1824, %v1828
        %v1834 = vsel %vm1509, %v1830, 0.0
        %1835 = vadd.xlane.f32.xlu0 %v1834
        %v1836 = vpop.xlane.xlu0 %1835
        %v1837 = vsel %vm1509, %v1831, 0.0
        %1838 = vadd.xlane.f32.xlu0 %v1837
        %v1839 = vpop.xlane.xlu0 %1838
        %v1840 = vsel %vm1509, %v1832, 0.0
        %1841 = vadd.xlane.f32.xlu0 %v1840
        %v1842 = vpop.xlane.xlu0 %1841
        %v1843 = vsel %vm1509, %v1833, 0.0
        %1844 = vadd.xlane.f32.xlu0 %v1843
        %v1845 = vpop.xlane.xlu0 %1844
        %v1846 = vmul.f32 %v1836, 0.25
        %v1847 = vmul.f32 %v1839, 0.25
        %v1848 = vmul.f32 %v1842, 0.25
        %v1849 = vmul.f32 %v1845, 0.25
        %v1850 = vsub.f32 %v1817, %v1846
        %v1851 = vsub.f32 %v1819, %v1847
        %v1852 = vsub.f32 %v1822, %v1848
        %v1853 = vsub.f32 %v1824, %v1849
        %v1854 = vmul.f32 %v1850, %v1850
        %v1855 = vmul.f32 %v1851, %v1851
        %v1856 = vmul.f32 %v1852, %v1852
        %v1857 = vmul.f32 %v1853, %v1853
        %v1858 = vmul.f32 %v1854, %v1828
        %v1859 = vmul.f32 %v1855, %v1828
        %v1860 = vmul.f32 %v1856, %v1828
        %v1861 = vmul.f32 %v1857, %v1828
        %v1862 = vsel %vm1509, %v1858, 0.0
        %1863 = vadd.xlane.f32.xlu0 %v1862
        %v1864 = vpop.xlane.xlu0 %1863
        %v1865 = vsel %vm1509, %v1859, 0.0
        %1866 = vadd.xlane.f32.xlu0 %v1865
        %v1867 = vpop.xlane.xlu0 %1866
        %v1868 = vsel %vm1509, %v1860, 0.0
        %1869 = vadd.xlane.f32.xlu0 %v1868
        %v1870 = vpop.xlane.xlu0 %1869
        %v1871 = vsel %vm1509, %v1861, 0.0
        %1872 = vadd.xlane.f32.xlu0 %v1871
        %v1873 = vpop.xlane.xlu0 %1872
        %v1874 = vmul.f32 %v1864, 0.25
        %v1875 = vmul.f32 %v1867, 0.25
        %v1876 = vmul.f32 %v1870, 0.25
        %v1877 = vmul.f32 %v1873, 0.25
        %v1878 = vadd.f32 %v1874, 1e-05
        %v1879 = vadd.f32 %v1875, 1e-05
        %v1880 = vadd.f32 %v1876, 1e-05
        %v1881 = vadd.f32 %v1877, 1e-05
        %v1882 = vrsqrt.pop %v1878
        %v1883 = vmul.f32 %v1882, %v1878
        %v1884 = vmul.f32 %v1883, %v1882
        %v1885 = vmul.f32 0.5, %v1884
        %v1886 = vsub.f32 1.5, %v1885
        %v1887 = vmul.f32 %v1882, %v1886
        %vm1888 = vweird.f32 %v1878
        %vm1889 = vweird.f32 %v1882
        %vm1890 = vmor %vm1888, %vm1889
        %v1891 = vsel %vm1890, %v1882, %v1887
        %v1892 = vrsqrt.pop %v1879
        %v1893 = vmul.f32 %v1892, %v1879
        %v1894 = vmul.f32 %v1893, %v1892
        %v1895 = vmul.f32 0.5, %v1894
        %v1896 = vsub.f32 1.5, %v1895
        %v1897 = vmul.f32 %v1892, %v1896
        %vm1898 = vweird.f32 %v1879
        %vm1899 = vweird.f32 %v1892
        %vm1900 = vmor %vm1898, %vm1899
        %v1901 = vsel %vm1900, %v1892, %v1897
        %v1902 = vrsqrt.pop %v1880
        %v1903 = vmul.f32 %v1902, %v1880
        %v1904 = vmul.f32 %v1903, %v1902
        %v1905 = vmul.f32 0.5, %v1904
        %v1906 = vsub.f32 1.5, %v1905
        %v1907 = vmul.f32 %v1902, %v1906
        %vm1908 = vweird.f32 %v1880
        %vm1909 = vweird.f32 %v1902
        %vm1910 = vmor %vm1908, %vm1909
        %v1911 = vsel %vm1910, %v1902, %v1907
        %v1912 = vrsqrt.pop %v1881
        %v1913 = vmul.f32 %v1912, %v1881
        %v1914 = vmul.f32 %v1913, %v1912
        %v1915 = vmul.f32 0.5, %v1914
        %v1916 = vsub.f32 1.5, %v1915
        %v1917 = vmul.f32 %v1912, %v1916
        %vm1918 = vweird.f32 %v1881
        %vm1919 = vweird.f32 %v1912
        %vm1920 = vmor %vm1918, %vm1919
        %v1921 = vsel %vm1920, %v1912, %v1917
        %v1922 = vmul.f32 %v1850, %v1891
        %v1923 = vmul.f32 %v1851, %v1901
        %v1924 = vmul.f32 %v1852, %v1911
        %v1925 = vmul.f32 %v1853, %v1921
        %v1926 = vld [vmem:[%s12] sm:$0xff]
        %v1927 = vld [vmem:[%s12 + $0x8] sm:$0xff]
        %v1928 = vld [vmem:[%s12 + $0x10] sm:$0xff]
        %v1929 = vld [vmem:[%s12 + $0x18] sm:$0xff]
        %1931 = vset.pattern.permute.xlu0 0
        %1932 = vperm.xlu0 %1931, %v1926
        %v1933 = vpop.permute.xlu0 %1932
        %1936 = vset.pattern.permute.xlu0 0
        %1937 = vperm.xlu0 %1936, %v1927
        %v1938 = vpop.permute.xlu0 %1937
        %1941 = vset.pattern.permute.xlu0 0
        %1942 = vperm.xlu0 %1941, %v1928
        %v1943 = vpop.permute.xlu0 %1942
        %1946 = vset.pattern.permute.xlu0 0
        %1947 = vperm.xlu0 %1946, %v1929
        %v1948 = vpop.permute.xlu0 %1947
        %v1950 = vmul.f32 %v1922, %v1933
        %v1951 = vmul.f32 %v1923, %v1938
        %v1952 = vmul.f32 %v1924, %v1943
        %v1953 = vmul.f32 %v1925, %v1948
        %v1954 = vld [vmem:[%s13] sm:$0xff]
        %v1955 = vld [vmem:[%s13 + $0x8] sm:$0xff]
        %v1956 = vld [vmem:[%s13 + $0x10] sm:$0xff]
        %v1957 = vld [vmem:[%s13 + $0x18] sm:$0xff]
        %1959 = vset.pattern.permute.xlu0 0
        %1960 = vperm.xlu0 %1959, %v1954
        %v1961 = vpop.permute.xlu0 %1960
        %1964 = vset.pattern.permute.xlu0 0
        %1965 = vperm.xlu0 %1964, %v1955
        %v1966 = vpop.permute.xlu0 %1965
        %1969 = vset.pattern.permute.xlu0 0
        %1970 = vperm.xlu0 %1969, %v1956
        %v1971 = vpop.permute.xlu0 %1970
        %1974 = vset.pattern.permute.xlu0 0
        %1975 = vperm.xlu0 %1974, %v1957
        %v1976 = vpop.permute.xlu0 %1975
        %v1978 = vadd.f32 %v1950, %v1961
        %v1979 = vadd.f32 %v1951, %v1966
        %v1980 = vadd.f32 %v1952, %v1971
        %v1981 = vadd.f32 %v1953, %v1976
        %vm1982 = vcmp.ge.f32.partialorder %v1978, 0.0
        %vm1983 = vcmp.ge.f32.partialorder %v1979, 0.0
        %vm1984 = vcmp.ge.f32.partialorder %v1980, 0.0
        %vm1985 = vcmp.ge.f32.partialorder %v1981, 0.0
        %v1986 = vmul.f32 %v1978, 0.2
        %v1987 = vmul.f32 %v1979, 0.2
        %v1988 = vmul.f32 %v1980, 0.2
        %v1989 = vmul.f32 %v1981, 0.2
        %v1990 = vsel %vm1982, %v1978, %v1986
        %v1991 = vsel %vm1983, %v1979, %v1987
        %v1992 = vsel %vm1984, %v1980, %v1988
        %v1993 = vsel %vm1985, %v1981, %v1989
        %v1994 = vpack.c.bf16 %v1991, %v1990
        %v1995 = vpack.c.bf16 %v1993, %v1992
        %v1996 = vld [vmem:[%s15] sm:$0xf]
        %v1998 = vsel %vm1509, %v1994, 0
        %v2001 = vsel %vm1509, %v1995, 0
        %vm2003 = vcmask 1042432
        %vm2004 = vcmask 1043456
        %v2005 = vsel %vm2003, 4294967295, 65535
        %v2006 = vsel %vm2004, %v2005, 0
        %v2008 = vand.u32 %v1996, %v2006
        %2010 = vmatpush.bf16.msra.mxu0 0
        %2011 = vmatpush.bf16.msra.mxu0 0
        %2012 = vmatpush.bf16.msra.mxu0 0
        %2013 = vmatpush.bf16.msra.mxu0 0
        %2014 = vmatpush.bf16.msra.mxu0 0
        %2015 = vmatpush.bf16.msra.mxu0 0
        %2016 = vmatpush.bf16.msra.mxu0 0
        %2017 = vmatpush.bf16.msra.mxu0 %v2008
        %2018 = vmatmul.bf16.gmra.mxu0 %v1998
        %v2019 = vpop.f32.mrf.mxu0
        %v2020 = vadd.f32 0.0, %v2019
        %v2021 = vpop.f32.mrf.mxu0
        %v2022 = vadd.f32 0.0, %v2021
        %2023 = vmatmul.bf16.gmra.mxu0 %v2001
        %v2024 = vpop.f32.mrf.mxu0
        %v2025 = vadd.f32 0.0, %v2024
        %v2026 = vpop.f32.mrf.mxu0
        %v2027 = vadd.f32 0.0, %v2026
        %2028 = vdwg.mxu0
        %v2029 = vld [vmem:[%s16] sm:$0xff]
        %v2030 = vld [vmem:[%s16 + $0x8] sm:$0xff]
        %v2031 = vld [vmem:[%s16 + $0x10] sm:$0xff]
        %v2032 = vld [vmem:[%s16 + $0x18] sm:$0xff]
        %2034 = vset.pattern.permute.xlu0 0
        %2035 = vperm.xlu0 %2034, %v2029
        %v2036 = vpop.permute.xlu0 %2035
        %2039 = vset.pattern.permute.xlu0 0
        %2040 = vperm.xlu0 %2039, %v2030
        %v2041 = vpop.permute.xlu0 %2040
        %2044 = vset.pattern.permute.xlu0 0
        %2045 = vperm.xlu0 %2044, %v2031
        %v2046 = vpop.permute.xlu0 %2045
        %2049 = vset.pattern.permute.xlu0 0
        %2050 = vperm.xlu0 %2049, %v2032
        %v2051 = vpop.permute.xlu0 %2050
        %v2053 = vmul.f32 %v2020, %v2036
        %v2054 = vmul.f32 %v2022, %v2041
        %v2055 = vmul.f32 %v2025, %v2046
        %v2056 = vmul.f32 %v2027, %v2051
        %vm2057 = vcmask 31744
        %v2058 = vsel %vm2057, %v2053, 0.0
        %v2059 = vsel %vm2057, %v2054, 0.0
        %v2060 = vadd.f32 %v2058, %v2059
        %v2061 = vsel %vm2057, %v2055, 0.0
        %v2062 = vadd.f32 %v2060, %v2061
        %v2063 = vsel %vm2057, %v2056, 0.0
        %v2064 = vadd.f32 %v2062, %v2063
        %v2065 = vrot.slane %v2064, 4
        %v2066 = vadd.f32 %v2064, %v2065
        %v2067 = vrot.slane %v2066, 2
        %v2068 = vadd.f32 %v2066, %v2067
        %v2069 = vrot.slane %v2068, 1
        %v2070 = vadd.f32 %v2068, %v2069
        %v2071 = vld [vmem:[#allocation7] sm:$0x1]
        %2073 = vset.pattern.permute.xlu0 0
        %2074 = vperm.xlu0 %2073, %v2071
        %v2075 = vpop.permute.xlu0 %2074
        %v2077 = vperm.slane %v2075, 0
        %v2078 = vadd.f32 %v2070, %v2077
        %vm2079 = vcmask 24576
        %2080 = vst.msk [vmem:[%s569] sm:$0x1] %vm2079, %v2078
        %s2081 = sand.u32 %s425, 1
        %s2082 = scalar_lea.sflag [#allocation9], %s2081
        %s2083 = sand.u32 %s425, 1
        %s2084 = scalar_lea.vmem [#allocation8], %s2083
        // Predicated region
        $region93: #{tpu_custom_call.1} parent=91 // pred_check
          %p2085 = pneg %p435
        $region94: #{tpu_custom_call.1} parent=91 // pred_check_branch
          %2087 = sbr.rel (%p2085) target = $region96
        $region95: #{tpu_custom_call.1} parent=91 // pred_region
          %2089 = vsyncadd %s2082, 0
          %s2090 = scalar_lea.hbm %s18, %s34
          %s2092 = sshll.u32 %s2084, 4
          %s2093 = int_to_ptr.vmem [resolvable:$true] %s2092
          %s2094 = sshll.u32 %s2090, 4
          %s2095 = int_to_ptr.hbm [resolvable:$true] %s2094
          %2097 = dma.vmem_to_hbm [thread:$0]  %s2093, 16, %s2095, %s2082
        $region96: #{tpu_custom_call.1} parent=91 // pred_fallthru
          _
      $region92: #{tpu_custom_call.1} parent=5 // pred_fallthru
        _
      %p2098 = scmp.le.s32.totalorder 2, %s29
      // Predicated region
      $region97: #{tpu_custom_call.1} parent=5 // pred_check
        %p2099 = pneg %p2098
      $region98: #{tpu_custom_call.1} parent=5 // pred_check_branch
        %2101 = sbr.rel (%p2099) target = $region100
      $region99: #{tpu_custom_call.1} parent=5 // pred_region
        %s2102 = ssub.s32 %s29, 2
        // Predicated region
        $region101: #{tpu_custom_call.1} parent=99 // pred_check
          %p2103 = pneg %p441
        $region102: #{tpu_custom_call.1} parent=99 // pred_check_branch
          %2105 = sbr.rel (%p2103) target = $region104
        $region103: #{tpu_custom_call.1} parent=99 // pred_region
          %s2106 = sand.u32 %s426, 1
          %s2107 = scalar_lea.sflag [#allocation9], %s2106
          %s2108 = sand.u32 %s426, 1
          %s2109 = scalar_lea.vmem [#allocation8], %s2108
          %2111 = dma.done %s2107, 16
        $region104: #{tpu_custom_call.1} parent=99 // pred_fallthru
          _
      $region100: #{tpu_custom_call.1} parent=5 // pred_fallthru
        _
    $region6: #{tpu_custom_call.1} parent=1 // loop_footer
      %s33 = sadd.s32 1, %s29
    $region7: #{tpu_custom_call.1} parent=1 // loop_footer_branch
      %28 = sbr.rel target = $region3
    $region8: #{tpu_custom_call.1} parent=1 // loop_exit
      _
    %2112 = vsyncpa [#allocation9], 1
    %s2113 = scalar_lea.sflag [#allocation9], 1
    %2114 = vsyncpa %s2113, 1

</llo_original>
